<compile_context>
chip_gen: v7x
topology: tpu7x:2x2x1
jax: 0.10.0
libtpu: 0.0.40
codegen_flags: <defaults>
</compile_context>

<pallas_src>
import math
import jax
import jax.numpy as jnp
from jax.experimental import pallas as pl
from jax.experimental.pallas import tpu as pltpu


def _model_kernel(xs_ref, win_ref, bin_ref, wpe_ref, mask_ref,
                  wqkv_ref, wo_ref, wfc_ref, wpr_ref, small_ref,
                  lnf_ref, wcls_ref, bcls_ref,
                  out_ref, h_ref):
    l = pl.program_id(1)
    n_layers = pl.num_programs(1)
    M, H = h_ref.shape                     # M = TB * S (batch-folded rows)
    TB, S, D = xs_ref.shape

    def layernorm(x, g, b):
        mu = jnp.mean(x, axis=-1, keepdims=True)
        var = jnp.mean((x - mu) ** 2, axis=-1, keepdims=True)
        return (x - mu) * jax.lax.rsqrt(var + 1e-5) * g + b

    # ---- embedding (read_in + learned positions), only on the first layer step ----
    @pl.when(l == 0)
    def _():
        x = xs_ref[...].reshape(M, D).astype(jnp.bfloat16)            # (M, D)
        h0 = jnp.dot(x, win_ref[...],
                     preferred_element_type=jnp.float32) + bin_ref[...]
        h_ref[...] = h0 + wpe_ref[...]                                # wpe pre-tiled to (M, H)

    h = h_ref[...]                                                    # (M, H) f32 carry

    # ---- unpack the packed per-layer small params (one DMA'd (10, FF) slab) ----
    small = small_ref[0]                                              # (10, FF) f32
    ln1_g = small[0:1, :H]
    ln1_b = small[1:2, :H]
    ln2_g = small[2:3, :H]
    ln2_b = small[3:4, :H]
    bq = small[4:5, :H]
    bk = small[5:6, :H]
    bv = small[6:7, :H]
    bo = small[7:8, :H]
    bpr = small[8:9, :H]
    bfc = small[9:10, :]                                              # (1, FF)

    # ---- attention sub-block (pre-LN, single head; 1/sqrt(H) folded into wq/bq) ----
    hn = layernorm(h, ln1_g, ln1_b).astype(jnp.bfloat16)              # (M, H) bf16
    q = jnp.dot(hn, wqkv_ref[0, 0], preferred_element_type=jnp.float32) + bq
    k = jnp.dot(hn, wqkv_ref[0, 1], preferred_element_type=jnp.float32) + bk
    v = jnp.dot(hn, wqkv_ref[0, 2], preferred_element_type=jnp.float32) + bv

    q3 = q.reshape(TB, S, H).astype(jnp.bfloat16)
    k3 = k.reshape(TB, S, H).astype(jnp.bfloat16)
    v3 = v.reshape(TB, S, H).astype(jnp.bfloat16)

    scores = jnp.einsum('bqd,bkd->bqk', q3, k3,
                        preferred_element_type=jnp.float32)           # (TB, S, S) f32
    scores = scores + mask_ref[...][None]                             # precomputed additive mask
    scores = scores - jnp.max(scores, axis=-1, keepdims=True)
    p = jnp.exp(scores)                                               # f32 softmax
    p = p * pl.reciprocal(jnp.sum(p, axis=-1, keepdims=True), approx=True)
    attn = jnp.einsum('bqk,bkd->bqd', p.astype(jnp.bfloat16), v3,
                      preferred_element_type=jnp.float32)             # (TB, S, H) f32
    attn = attn.reshape(M, H)
    attn = jnp.dot(attn.astype(jnp.bfloat16), wo_ref[0],
                   preferred_element_type=jnp.float32) + bo
    h = h + attn

    # ---- MLP sub-block ----
    hn = layernorm(h, ln2_g, ln2_b).astype(jnp.bfloat16)
    m = jnp.dot(hn, wfc_ref[0], preferred_element_type=jnp.float32) + bfc
    m = jax.nn.gelu(m, approximate=True)                              # f32 elementwise
    m = jnp.dot(m.astype(jnp.bfloat16), wpr_ref[0],
                preferred_element_type=jnp.float32) + bpr
    h = h + m
    h_ref[...] = h

    # ---- finalize: select token, ln_f on that token only, classifier head ----
    @pl.when(l == n_layers - 1)
    def _():
        last_idx = ((S - 1) // 2) * 2        # == index of h[:, ::2, :][:, -1, :]
        last = h.reshape(TB, S, H)[:, last_idx, :]                    # (TB, H) f32
        last = layernorm(last, lnf_ref[0:1, :], lnf_ref[1:2, :])
        logits = jnp.dot(last.astype(jnp.bfloat16), wcls_ref[...],
                         preferred_element_type=jnp.float32) + bcls_ref[...]
        out_ref[...] = logits                                         # (TB, 128) lane-dense


def _pick_batch_tile(B, S):
    # Aim for TB*S >= 256 rows into the MXU (v6e/v7x tile depth); never exceed B.
    target = max(1, -(-256 // S))
    if B <= target:
        return B                        # single batch tile; block dim == full array dim
    return ((target + 7) // 8) * 8      # multiple batch tiles need sublane-aligned TB


def linear_layer_model_forward(params, xs, ys):
    # ys is part of the signature but unused in the PyTorch forward.
    del ys
    B, S, D = xs.shape
    H = params["win"].shape[1]
    L = params["wqkv"].shape[0]
    FF = params["wfc"].shape[2]
    CP = params["wcls"].shape[1]          # lane-padded classifier width (128)
    C = params["num_classes"]

    # ---- batch tiling (fold TB batch elements into one grid step) ----
    TB = _pick_batch_tile(B, S)
    n_bt = pl.cdiv(B, TB)                 # for v7x megacore, ideally even; demo uses 1
    B_pad = n_bt * TB
    if B_pad != B:
        xs = jnp.pad(xs, ((0, B_pad - B), (0, 0), (0, 0)))
    M = TB * S

    # position embedding pre-tiled over the batch tile (added to the flattened (M, H) carry)
    wpe = params["wpe"][:S]               # guard: position table may be longer than S
    wpe_tiled = jnp.tile(wpe, (TB, 1))    # (M, H) f32

    # precomputed additive causal mask (replaces per-layer iota/compare/where)
    r = jnp.arange(S)
    mask = jnp.where(r[:, None] >= r[None, :], 0.0, -1e30).astype(jnp.float32)

    args = (xs, params["win"], params["bin"], wpe_tiled, mask,
            params["wqkv"], params["wo"], params["wfc"], params["wpr"],
            params["small"], params["lnf"], params["wcls"], params["bcls"])

    in_specs = [
        pl.BlockSpec((TB, S, D), lambda b, l: (b, 0, 0)),        # xs: per batch tile
        pl.BlockSpec((D, H), lambda b, l: (0, 0)),               # read_in W (resident)
        pl.BlockSpec((1, H), lambda b, l: (0, 0)),               # read_in bias
        pl.BlockSpec((M, H), lambda b, l: (0, 0)),               # pos-emb (tiled, resident)
        pl.BlockSpec((S, S), lambda b, l: (0, 0)),               # additive causal mask
        pl.BlockSpec((1, 3, H, H), lambda b, l: (l, 0, 0, 0)),   # wq/wk/wv, streamed
        pl.BlockSpec((1, H, H), lambda b, l: (l, 0, 0)),         # wo, streamed
        pl.BlockSpec((1, H, FF), lambda b, l: (l, 0, 0)),        # wfc, streamed
        pl.BlockSpec((1, FF, H), lambda b, l: (l, 0, 0)),        # wpr, streamed
        pl.BlockSpec((1, 10, FF), lambda b, l: (l, 0, 0)),       # packed small params
        pl.BlockSpec((2, H), lambda b, l: (0, 0)),               # ln_f gamma/beta
        pl.BlockSpec((H, CP), lambda b, l: (0, 0)),              # classifier W (padded)
        pl.BlockSpec((1, CP), lambda b, l: (0, 0)),              # classifier b (padded)
    ]
    out_spec = pl.BlockSpec((TB, CP), lambda b, l: (b, 0))

    # ---- cost estimate reflecting actual traffic (weights fetched once per batch tile) ----
    per_layer_weight_bytes = (3 * H * H + H * H + H * FF + FF * H) * 2 + 10 * FF * 4
    resident_bytes = D * H * 2 + H * 4 + M * H * 4 + S * S * 4 + 2 * H * 4 + H * CP * 2 + CP * 4
    bytes_accessed = int(n_bt * L * per_layer_weight_bytes + resident_bytes
                         + B_pad * S * D * 4 + B_pad * CP * 4)
    per_tile_layer_flops = 8 * M * H * H + 4 * TB * S * S * H + 4 * M * H * FF
    flops = int(n_bt * (2 * M * D * H + L * per_tile_layer_flops) + 2 * B_pad * H * CP)
    transcendentals = int(B_pad * L * (S * S + S * FF))

    # ---- VMEM budget derived from actual residency; capped at 40 MiB (fits v7x 64 MiB/TC) ----
    vmem_need = (2 * per_layer_weight_bytes          # double-buffered streamed layer weights
                 + 2 * TB * S * D * 4                # xs double buffer
                 + resident_bytes                    # resident weights / mask / pos-emb
                 + M * H * 4                         # hidden-state carry scratch
                 + 2 * TB * CP * 4)                  # output double buffer
    vmem_limit = int(min(max(2 * vmem_need, 16 * 1024 * 1024), 40 * 1024 * 1024))

    logits_padded = pl.pallas_call(
        _model_kernel,
        out_shape=jax.ShapeDtypeStruct((B_pad, CP), jnp.float32),
        grid=(n_bt, L),
        in_specs=in_specs,
        out_specs=out_spec,
        scratch_shapes=[pltpu.VMEM((M, H), jnp.float32)],        # per-tile hidden carry
        compiler_params=pltpu.CompilerParams(
            dimension_semantics=("parallel", "arbitrary"),
            vmem_limit_bytes=vmem_limit),
        cost_estimate=pl.CostEstimate(
            flops=flops, transcendentals=transcendentals,
            bytes_accessed=bytes_accessed),
    )(*args)
    return logits_padded[:B, :C]


def init_params(key, n_dims, hidden, num_classes, seq_len, n_layers):
    ks = jax.random.split(key, 8)
    std = 0.02
    FF = 4 * hidden
    f32, bf16 = jnp.float32, jnp.bfloat16
    CP = 128                                  # lane-padded classifier width

    # single-head attention: head_dim == hidden; fold 1/sqrt(head_dim) into q proj (one-time)
    scale = 1.0 / math.sqrt(hidden)
    wqkv = jax.random.normal(ks[2], (n_layers, 3, hidden, hidden), f32) * std
    wqkv = wqkv.at[:, 0].multiply(scale)

    # packed per-layer small params, one streamed (L, 10, FF) slab:
    #   rows: 0 ln1_g, 1 ln1_b, 2 ln2_g, 3 ln2_b, 4 bq, 5 bk, 6 bv, 7 bo, 8 bpr, 9 bfc
    # (H-wide rows occupy the first `hidden` lanes; all biases are zero in this stand-in,
    #  so the 1/sqrt(H) fold on bq is a no-op.)
    small = jnp.zeros((n_layers, 10, FF), f32)
    small = small.at[:, 0, :hidden].set(1.0)      # ln1 gamma
    small = small.at[:, 2, :hidden].set(1.0)      # ln2 gamma

    lnf = jnp.stack([jnp.ones((hidden,), f32),
                     jnp.zeros((hidden,), f32)], axis=0)    # (2, H)

    wcls = jnp.zeros((hidden, CP), f32)
    wcls = wcls.at[:, :num_classes].set(
        jax.random.normal(ks[6], (hidden, num_classes), f32) * std)

    params = {
        # big matmul weights stored in bf16 (MXU operands); LN params / biases in f32
        "win":   (jax.random.normal(ks[0], (n_dims, hidden), f32) * std).astype(bf16),
        "bin":   jnp.zeros((1, hidden), f32),
        "wpe":   jax.random.normal(ks[1], (seq_len, hidden), f32) * std,
        "wqkv":  wqkv.astype(bf16),
        "wo":    (jax.random.normal(ks[3], (n_layers, hidden, hidden), f32) * std).astype(bf16),
        "wfc":   (jax.random.normal(ks[4], (n_layers, hidden, FF), f32) * std).astype(bf16),
        "wpr":   (jax.random.normal(ks[5], (n_layers, FF, hidden), f32) * std).astype(bf16),
        "small": small,
        "lnf":   lnf,
        "wcls":  wcls.astype(bf16),
        "bcls":  jnp.zeros((1, CP), f32),
        "num_classes": num_classes,
    }
    return params


if __name__ == "__main__":
    B, S, N_DIMS = 2, 8, 4          # batch, seq, input feature dim
    HIDDEN, NUM_CLASSES = 32, 5     # nn.Linear(hidden_size, num_classes)
    N_LAYERS = 2

    key = jax.random.PRNGKey(0)
    k_params, k_xs, k_ys = jax.random.split(key, 3)

    params = init_params(k_params, N_DIMS, HIDDEN, NUM_CLASSES, S, N_LAYERS)
    xs = jax.random.normal(k_xs, (B, S, N_DIMS), jnp.float32)
    ys = jax.random.normal(k_ys, (B, S), jnp.float32)   # unused by forward (matches PyTorch)

    logits = linear_layer_model_forward(params, xs, ys)
    jax.block_until_ready(logits)
    assert logits.shape == (B, NUM_CLASSES)
    assert bool(jnp.all(jnp.isfinite(logits)))
    print("KERNEL_OK")
</pallas_src>

<mosaic_0001>
module attributes {stable_mosaic.version = 11 : i64} {
  func.func @_model_kernel(%arg0: i32, %arg1: i32, %arg2: memref<2x8x4xf32, #tpu.memory_space<vmem>>, %arg3: memref<4x32xbf16, #tpu.memory_space<vmem>>, %arg4: memref<1x32xf32, #tpu.memory_space<vmem>>, %arg5: memref<16x32xf32, #tpu.memory_space<vmem>>, %arg6: memref<8x8xf32, #tpu.memory_space<vmem>>, %arg7: memref<1x3x32x32xbf16, #tpu.memory_space<vmem>>, %arg8: memref<1x32x32xbf16, #tpu.memory_space<vmem>>, %arg9: memref<1x32x128xbf16, #tpu.memory_space<vmem>>, %arg10: memref<1x128x32xbf16, #tpu.memory_space<vmem>>, %arg11: memref<1x10x128xf32, #tpu.memory_space<vmem>>, %arg12: memref<2x32xf32, #tpu.memory_space<vmem>>, %arg13: memref<32x128xbf16, #tpu.memory_space<vmem>>, %arg14: memref<1x128xf32, #tpu.memory_space<vmem>>, %arg15: memref<2x128xf32, #tpu.memory_space<vmem>>, %arg16: memref<16x32xf32, #tpu.memory_space<vmem>>) attributes {dimension_semantics = [#tpu.dimension_semantics<parallel>, #tpu.dimension_semantics<arbitrary>], iteration_bounds = array<i64: 1, 2>, scalar_prefetch = 0 : i64, scratch_operands = 1 : i64, tpu.core_type = #tpu.core_type<tc>, window_params = [{transform_indices = @transform_0, window_bounds = array<i64: 2, 8, 4>}, {pipeline_mode = #tpu.pipeline_mode<synchronous>, transform_indices = @transform_1, window_bounds = array<i64: 4, 32>}, {pipeline_mode = #tpu.pipeline_mode<synchronous>, transform_indices = @transform_2, window_bounds = array<i64: 1, 32>}, {pipeline_mode = #tpu.pipeline_mode<synchronous>, transform_indices = @transform_3, window_bounds = array<i64: 16, 32>}, {pipeline_mode = #tpu.pipeline_mode<synchronous>, transform_indices = @transform_4, window_bounds = array<i64: 8, 8>}, {transform_indices = @transform_5, window_bounds = array<i64: 1, 3, 32, 32>}, {transform_indices = @transform_6, window_bounds = array<i64: 1, 32, 32>}, {transform_indices = @transform_7, window_bounds = array<i64: 1, 32, 128>}, {transform_indices = @transform_8, window_bounds = array<i64: 1, 128, 32>}, {transform_indices = @transform_9, window_bounds = array<i64: 1, 10, 128>}, {pipeline_mode = #tpu.pipeline_mode<synchronous>, transform_indices = @transform_10, window_bounds = array<i64: 2, 32>}, {pipeline_mode = #tpu.pipeline_mode<synchronous>, transform_indices = @transform_11, window_bounds = array<i64: 32, 128>}, {pipeline_mode = #tpu.pipeline_mode<synchronous>, transform_indices = @transform_12, window_bounds = array<i64: 1, 128>}, {transform_indices = @transform_13, window_bounds = array<i64: 2, 128>}]} {
    %c0_i32 = arith.constant 0 : i32
    %0 = arith.cmpi eq, %arg1, %c0_i32 : i32
    %1 = arith.extui %0 : i1 to i32
    %c0_i32_0 = arith.constant 0 : i32
    %2 = arith.cmpi ne, %1, %c0_i32_0 : i32
    scf.if %2 {
      %c0_52 = arith.constant 0 : index
      %c0_53 = arith.constant 0 : index
      %c0_54 = arith.constant 0 : index
      %137 = vector.load %arg2[%c0_52, %c0_53, %c0_54] : memref<2x8x4xf32, #tpu.memory_space<vmem>>, vector<2x8x4xf32>
      %138 = vector.shape_cast %137 : vector<2x8x4xf32> to vector<16x4xf32>
      %139 = arith.truncf %138 : vector<16x4xf32> to vector<16x4xbf16>
      %c0_55 = arith.constant 0 : index
      %c0_56 = arith.constant 0 : index
      %140 = vector.load %arg3[%c0_55, %c0_56] : memref<4x32xbf16, #tpu.memory_space<vmem>>, vector<4x32xbf16>
      %cst_57 = arith.constant dense<0.000000e+00> : vector<16x32xf32>
      %141 = tpu.matmul %139, %140, %cst_57 {dimension_numbers = #tpu.dot_dimension_numbers<[1], [0], [0], [1], [0, 0, 1, 1], [], []>} : vector<16x4xbf16>, vector<4x32xbf16>, vector<16x32xf32> -> vector<16x32xf32>
      %c0_58 = arith.constant 0 : index
      %c0_59 = arith.constant 0 : index
      %142 = vector.load %arg4[%c0_58, %c0_59] : memref<1x32xf32, #tpu.memory_space<vmem>>, vector<1x32xf32>
      %143 = vector.broadcast %142 : vector<1x32xf32> to vector<16x32xf32>
      %144 = arith.addf %141, %143 : vector<16x32xf32>
      %c0_60 = arith.constant 0 : index
      %c0_61 = arith.constant 0 : index
      %145 = vector.load %arg5[%c0_60, %c0_61] : memref<16x32xf32, #tpu.memory_space<vmem>>, vector<16x32xf32>
      %146 = arith.addf %144, %145 : vector<16x32xf32>
      %c0_62 = arith.constant 0 : index
      %c0_63 = arith.constant 0 : index
      %147 = vector.load %arg16[%c0_62, %c0_63] : memref<16x32xf32, #tpu.memory_space<vmem>>, vector<16x32xf32>
      tpu.vector_store %arg16[%c0_62, %c0_63], %146 {strides = array<i32>} : memref<16x32xf32, #tpu.memory_space<vmem>>, vector<16x32xf32>,
    } else {
    }
    %c0 = arith.constant 0 : index
    %c0_1 = arith.constant 0 : index
    %3 = vector.load %arg16[%c0, %c0_1] : memref<16x32xf32, #tpu.memory_space<vmem>>, vector<16x32xf32>
    %c0_2 = arith.constant 0 : index
    %c0_3 = arith.constant 0 : index
    %c0_4 = arith.constant 0 : index
    %4 = vector.load %arg11[%c0_2, %c0_3, %c0_4] : memref<1x10x128xf32, #tpu.memory_space<vmem>>, vector<1x10x128xf32>
    %5 = vector.shape_cast %4 : vector<1x10x128xf32> to vector<10x128xf32>
    %6 = vector.extract_strided_slice %5 {offsets = [0, 0], sizes = [1, 32], strides = [1, 1]} : vector<10x128xf32> to vector<1x32xf32>
    %7 = vector.extract_strided_slice %5 {offsets = [1, 0], sizes = [1, 32], strides = [1, 1]} : vector<10x128xf32> to vector<1x32xf32>
    %8 = vector.extract_strided_slice %5 {offsets = [2, 0], sizes = [1, 32], strides = [1, 1]} : vector<10x128xf32> to vector<1x32xf32>
    %9 = vector.extract_strided_slice %5 {offsets = [3, 0], sizes = [1, 32], strides = [1, 1]} : vector<10x128xf32> to vector<1x32xf32>
    %10 = vector.extract_strided_slice %5 {offsets = [4, 0], sizes = [1, 32], strides = [1, 1]} : vector<10x128xf32> to vector<1x32xf32>
    %11 = vector.extract_strided_slice %5 {offsets = [5, 0], sizes = [1, 32], strides = [1, 1]} : vector<10x128xf32> to vector<1x32xf32>
    %12 = vector.extract_strided_slice %5 {offsets = [6, 0], sizes = [1, 32], strides = [1, 1]} : vector<10x128xf32> to vector<1x32xf32>
    %13 = vector.extract_strided_slice %5 {offsets = [7, 0], sizes = [1, 32], strides = [1, 1]} : vector<10x128xf32> to vector<1x32xf32>
    %14 = vector.extract_strided_slice %5 {offsets = [8, 0], sizes = [1, 32], strides = [1, 1]} : vector<10x128xf32> to vector<1x32xf32>
    %15 = vector.extract_strided_slice %5 {offsets = [9, 0], sizes = [1, 128], strides = [1, 1]} : vector<10x128xf32> to vector<1x128xf32>
    %cst = arith.constant dense<0.000000e+00> : vector<16xf32>
    %16 = vector.multi_reduction <add>, %3, %cst [1] : vector<16x32xf32> to vector<16xf32>
    %17 = vector.shape_cast %16 : vector<16xf32> to vector<16x1xf32>
    %cst_5 = arith.constant 3.200000e+01 : f32
    %18 = vector.broadcast %cst_5 : f32 to vector<16x1xf32>
    %19 = arith.divf %17, %18 : vector<16x1xf32>
    %20 = vector.broadcast %19 : vector<16x1xf32> to vector<16x32xf32>
    %21 = arith.subf %3, %20 : vector<16x32xf32>
    %22 = arith.mulf %21, %21 : vector<16x32xf32>
    %cst_6 = arith.constant dense<0.000000e+00> : vector<16xf32>
    %23 = vector.multi_reduction <add>, %22, %cst_6 [1] : vector<16x32xf32> to vector<16xf32>
    %24 = vector.shape_cast %23 : vector<16xf32> to vector<16x1xf32>
    %cst_7 = arith.constant 3.200000e+01 : f32
    %25 = vector.broadcast %cst_7 : f32 to vector<16x1xf32>
    %26 = arith.divf %24, %25 : vector<16x1xf32>
    %27 = vector.broadcast %19 : vector<16x1xf32> to vector<16x32xf32>
    %28 = arith.subf %3, %27 : vector<16x32xf32>
    %cst_8 = arith.constant 9.99999974E-6 : f32
    %29 = vector.broadcast %cst_8 : f32 to vector<16x1xf32>
    %30 = arith.addf %26, %29 : vector<16x1xf32>
    %31 = math.rsqrt %30 : vector<16x1xf32>
    %32 = vector.broadcast %31 : vector<16x1xf32> to vector<16x32xf32>
    %33 = arith.mulf %28, %32 : vector<16x32xf32>
    %34 = vector.broadcast %6 : vector<1x32xf32> to vector<16x32xf32>
    %35 = arith.mulf %33, %34 : vector<16x32xf32>
    %36 = vector.broadcast %7 : vector<1x32xf32> to vector<16x32xf32>
    %37 = arith.addf %35, %36 : vector<16x32xf32>
    %38 = arith.truncf %37 : vector<16x32xf32> to vector<16x32xbf16>
    %c0_9 = arith.constant 0 : index
    %c0_10 = arith.constant 0 : index
    %c0_11 = arith.constant 0 : index
    %c0_12 = arith.constant 0 : index
    %39 = vector.load %arg7[%c0_9, %c0_10, %c0_11, %c0_12] : memref<1x3x32x32xbf16, #tpu.memory_space<vmem>>, vector<1x1x32x32xbf16>
    %40 = vector.shape_cast %39 : vector<1x1x32x32xbf16> to vector<32x32xbf16>
    %cst_13 = arith.constant dense<0.000000e+00> : vector<16x32xf32>
    %41 = tpu.matmul %38, %40, %cst_13 {dimension_numbers = #tpu.dot_dimension_numbers<[1], [0], [0], [1], [0, 0, 1, 1], [], []>} : vector<16x32xbf16>, vector<32x32xbf16>, vector<16x32xf32> -> vector<16x32xf32>
    %42 = vector.broadcast %10 : vector<1x32xf32> to vector<16x32xf32>
    %43 = arith.addf %41, %42 : vector<16x32xf32>
    %c0_14 = arith.constant 0 : index
    %c1 = arith.constant 1 : index
    %c0_15 = arith.constant 0 : index
    %c0_16 = arith.constant 0 : index
    %44 = vector.load %arg7[%c0_14, %c1, %c0_15, %c0_16] : memref<1x3x32x32xbf16, #tpu.memory_space<vmem>>, vector<1x1x32x32xbf16>
    %45 = vector.shape_cast %44 : vector<1x1x32x32xbf16> to vector<32x32xbf16>
    %cst_17 = arith.constant dense<0.000000e+00> : vector<16x32xf32>
    %46 = tpu.matmul %38, %45, %cst_17 {dimension_numbers = #tpu.dot_dimension_numbers<[1], [0], [0], [1], [0, 0, 1, 1], [], []>} : vector<16x32xbf16>, vector<32x32xbf16>, vector<16x32xf32> -> vector<16x32xf32>
    %47 = vector.broadcast %11 : vector<1x32xf32> to vector<16x32xf32>
    %48 = arith.addf %46, %47 : vector<16x32xf32>
    %c0_18 = arith.constant 0 : index
    %c2 = arith.constant 2 : index
    %c0_19 = arith.constant 0 : index
    %c0_20 = arith.constant 0 : index
    %49 = vector.load %arg7[%c0_18, %c2, %c0_19, %c0_20] : memref<1x3x32x32xbf16, #tpu.memory_space<vmem>>, vector<1x1x32x32xbf16>
    %50 = vector.shape_cast %49 : vector<1x1x32x32xbf16> to vector<32x32xbf16>
    %cst_21 = arith.constant dense<0.000000e+00> : vector<16x32xf32>
    %51 = tpu.matmul %38, %50, %cst_21 {dimension_numbers = #tpu.dot_dimension_numbers<[1], [0], [0], [1], [0, 0, 1, 1], [], []>} : vector<16x32xbf16>, vector<32x32xbf16>, vector<16x32xf32> -> vector<16x32xf32>
    %52 = vector.broadcast %12 : vector<1x32xf32> to vector<16x32xf32>
    %53 = arith.addf %51, %52 : vector<16x32xf32>
    %54 = vector.shape_cast %43 : vector<16x32xf32> to vector<2x8x32xf32>
    %55 = arith.truncf %54 : vector<2x8x32xf32> to vector<2x8x32xbf16>
    %56 = vector.shape_cast %48 : vector<16x32xf32> to vector<2x8x32xf32>
    %57 = arith.truncf %56 : vector<2x8x32xf32> to vector<2x8x32xbf16>
    %58 = vector.shape_cast %53 : vector<16x32xf32> to vector<2x8x32xf32>
    %59 = arith.truncf %58 : vector<2x8x32xf32> to vector<2x8x32xbf16>
    "tpu.trace_start"() <{level = 10 : i32, message = "bqd,bkd->bqk"}> : () -> ()
    %cst_22 = arith.constant dense<0.000000e+00> : vector<2x8x8xf32>
    %60 = tpu.matmul %55, %57, %cst_22 {dimension_numbers = #tpu.dot_dimension_numbers<[2], [2], [1], [1], [0, 0, 0, 1, 1, 1], [0], [0]>} : vector<2x8x32xbf16>, vector<2x8x32xbf16>, vector<2x8x8xf32> -> vector<2x8x8xf32>
    "tpu.trace_stop"() : () -> ()
    %c0_23 = arith.constant 0 : index
    %c0_24 = arith.constant 0 : index
    %61 = vector.load %arg6[%c0_23, %c0_24] : memref<8x8xf32, #tpu.memory_space<vmem>>, vector<8x8xf32>
    %62 = vector.shape_cast %61 : vector<8x8xf32> to vector<1x8x8xf32>
    %63 = vector.broadcast %62 : vector<1x8x8xf32> to vector<2x8x8xf32>
    %64 = arith.addf %60, %63 : vector<2x8x8xf32>
    %cst_25 = arith.constant dense<0xFF800000> : vector<2x8xf32>
    %65 = vector.multi_reduction <maximumf>, %64, %cst_25 [2] : vector<2x8x8xf32> to vector<2x8xf32>
    %66 = vector.shape_cast %65 : vector<2x8xf32> to vector<2x8x1xf32>
    %67 = vector.broadcast %66 : vector<2x8x1xf32> to vector<2x8x8xf32>
    %68 = arith.subf %64, %67 : vector<2x8x8xf32>
    %69 = math.exp %68 : vector<2x8x8xf32>
    %cst_26 = arith.constant dense<0.000000e+00> : vector<2x8xf32>
    %70 = vector.multi_reduction <add>, %69, %cst_26 [2] : vector<2x8x8xf32> to vector<2x8xf32>
    %71 = vector.shape_cast %70 : vector<2x8xf32> to vector<2x8x1xf32>
    %72 = tpu.reciprocal %71 {approx = true} : vector<2x8x1xf32> -> vector<2x8x1xf32>
    %73 = vector.broadcast %72 : vector<2x8x1xf32> to vector<2x8x8xf32>
    %74 = arith.mulf %69, %73 : vector<2x8x8xf32>
    %75 = arith.truncf %74 : vector<2x8x8xf32> to vector<2x8x8xbf16>
    "tpu.trace_start"() <{level = 10 : i32, message = "bqk,bkd->bqd"}> : () -> ()
    %cst_27 = arith.constant dense<0.000000e+00> : vector<2x8x32xf32>
    %76 = tpu.matmul %75, %59, %cst_27 {dimension_numbers = #tpu.dot_dimension_numbers<[2], [1], [1], [2], [0, 0, 0, 1, 1, 2], [0], [0]>} : vector<2x8x8xbf16>, vector<2x8x32xbf16>, vector<2x8x32xf32> -> vector<2x8x32xf32>
    "tpu.trace_stop"() : () -> ()
    %77 = vector.shape_cast %76 : vector<2x8x32xf32> to vector<16x32xf32>
    %78 = arith.truncf %77 : vector<16x32xf32> to vector<16x32xbf16>
    %c0_28 = arith.constant 0 : index
    %c0_29 = arith.constant 0 : index
    %c0_30 = arith.constant 0 : index
    %79 = vector.load %arg8[%c0_28, %c0_29, %c0_30] : memref<1x32x32xbf16, #tpu.memory_space<vmem>>, vector<1x32x32xbf16>
    %80 = vector.shape_cast %79 : vector<1x32x32xbf16> to vector<32x32xbf16>
    %cst_31 = arith.constant dense<0.000000e+00> : vector<16x32xf32>
    %81 = tpu.matmul %78, %80, %cst_31 {dimension_numbers = #tpu.dot_dimension_numbers<[1], [0], [0], [1], [0, 0, 1, 1], [], []>} : vector<16x32xbf16>, vector<32x32xbf16>, vector<16x32xf32> -> vector<16x32xf32>
    %82 = vector.broadcast %13 : vector<1x32xf32> to vector<16x32xf32>
    %83 = arith.addf %81, %82 : vector<16x32xf32>
    %84 = arith.addf %3, %83 : vector<16x32xf32>
    %cst_32 = arith.constant dense<0.000000e+00> : vector<16xf32>
    %85 = vector.multi_reduction <add>, %84, %cst_32 [1] : vector<16x32xf32> to vector<16xf32>
    %86 = vector.shape_cast %85 : vector<16xf32> to vector<16x1xf32>
    %cst_33 = arith.constant 3.200000e+01 : f32
    %87 = vector.broadcast %cst_33 : f32 to vector<16x1xf32>
    %88 = arith.divf %86, %87 : vector<16x1xf32>
    %89 = vector.broadcast %88 : vector<16x1xf32> to vector<16x32xf32>
    %90 = arith.subf %84, %89 : vector<16x32xf32>
    %91 = arith.mulf %90, %90 : vector<16x32xf32>
    %cst_34 = arith.constant dense<0.000000e+00> : vector<16xf32>
    %92 = vector.multi_reduction <add>, %91, %cst_34 [1] : vector<16x32xf32> to vector<16xf32>
    %93 = vector.shape_cast %92 : vector<16xf32> to vector<16x1xf32>
    %cst_35 = arith.constant 3.200000e+01 : f32
    %94 = vector.broadcast %cst_35 : f32 to vector<16x1xf32>
    %95 = arith.divf %93, %94 : vector<16x1xf32>
    %96 = vector.broadcast %88 : vector<16x1xf32> to vector<16x32xf32>
    %97 = arith.subf %84, %96 : vector<16x32xf32>
    %cst_36 = arith.constant 9.99999974E-6 : f32
    %98 = vector.broadcast %cst_36 : f32 to vector<16x1xf32>
    %99 = arith.addf %95, %98 : vector<16x1xf32>
    %100 = math.rsqrt %99 : vector<16x1xf32>
    %101 = vector.broadcast %100 : vector<16x1xf32> to vector<16x32xf32>
    %102 = arith.mulf %97, %101 : vector<16x32xf32>
    %103 = vector.broadcast %8 : vector<1x32xf32> to vector<16x32xf32>
    %104 = arith.mulf %102, %103 : vector<16x32xf32>
    %105 = vector.broadcast %9 : vector<1x32xf32> to vector<16x32xf32>
    %106 = arith.addf %104, %105 : vector<16x32xf32>
    %107 = arith.truncf %106 : vector<16x32xf32> to vector<16x32xbf16>
    %c0_37 = arith.constant 0 : index
    %c0_38 = arith.constant 0 : index
    %c0_39 = arith.constant 0 : index
    %108 = vector.load %arg9[%c0_37, %c0_38, %c0_39] : memref<1x32x128xbf16, #tpu.memory_space<vmem>>, vector<1x32x128xbf16>
    %109 = vector.shape_cast %108 : vector<1x32x128xbf16> to vector<32x128xbf16>
    %cst_40 = arith.constant dense<0.000000e+00> : vector<16x128xf32>
    %110 = tpu.matmul %107, %109, %cst_40 {dimension_numbers = #tpu.dot_dimension_numbers<[1], [0], [0], [1], [0, 0, 1, 1], [], []>} : vector<16x32xbf16>, vector<32x128xbf16>, vector<16x128xf32> -> vector<16x128xf32>
    %111 = vector.broadcast %15 : vector<1x128xf32> to vector<16x128xf32>
    %112 = arith.addf %110, %111 : vector<16x128xf32>
    %113 = arith.mulf %112, %112 : vector<16x128xf32>
    %114 = arith.mulf %112, %113 : vector<16x128xf32>
    %cst_41 = arith.constant 4.471500e-02 : f32
    %115 = vector.broadcast %cst_41 : f32 to vector<16x128xf32>
    %116 = arith.mulf %115, %114 : vector<16x128xf32>
    %117 = arith.addf %112, %116 : vector<16x128xf32>
    %cst_42 = arith.constant 0.797884583 : f32
    %118 = vector.broadcast %cst_42 : f32 to vector<16x128xf32>
    %119 = arith.mulf %118, %117 : vector<16x128xf32>
    %120 = math.tanh %119 : vector<16x128xf32>
    %cst_43 = arith.constant 1.000000e+00 : f32
    %121 = vector.broadcast %cst_43 : f32 to vector<16x128xf32>
    %122 = arith.addf %121, %120 : vector<16x128xf32>
    %cst_44 = arith.constant 5.000000e-01 : f32
    %123 = vector.broadcast %cst_44 : f32 to vector<16x128xf32>
    %124 = arith.mulf %123, %122 : vector<16x128xf32>
    %125 = arith.mulf %112, %124 : vector<16x128xf32>
    %126 = arith.truncf %125 : vector<16x128xf32> to vector<16x128xbf16>
    %c0_45 = arith.constant 0 : index
    %c0_46 = arith.constant 0 : index
    %c0_47 = arith.constant 0 : index
    %127 = vector.load %arg10[%c0_45, %c0_46, %c0_47] : memref<1x128x32xbf16, #tpu.memory_space<vmem>>, vector<1x128x32xbf16>
    %128 = vector.shape_cast %127 : vector<1x128x32xbf16> to vector<128x32xbf16>
    %cst_48 = arith.constant dense<0.000000e+00> : vector<16x32xf32>
    %129 = tpu.matmul %126, %128, %cst_48 {dimension_numbers = #tpu.dot_dimension_numbers<[1], [0], [0], [1], [0, 0, 1, 1], [], []>} : vector<16x128xbf16>, vector<128x32xbf16>, vector<16x32xf32> -> vector<16x32xf32>
    %130 = vector.broadcast %14 : vector<1x32xf32> to vector<16x32xf32>
    %131 = arith.addf %129, %130 : vector<16x32xf32>
    %132 = arith.addf %84, %131 : vector<16x32xf32>
    %c0_49 = arith.constant 0 : index
    %c0_50 = arith.constant 0 : index
    %133 = vector.load %arg16[%c0_49, %c0_50] : memref<16x32xf32, #tpu.memory_space<vmem>>, vector<16x32xf32>
    tpu.vector_store %arg16[%c0_49, %c0_50], %132 {strides = array<i32>} : memref<16x32xf32, #tpu.memory_space<vmem>>, vector<16x32xf32>,
    %c1_i32 = arith.constant 1 : i32
    %134 = arith.cmpi eq, %arg1, %c1_i32 : i32
    %135 = arith.extui %134 : i1 to i32
    %c0_i32_51 = arith.constant 0 : i32
    %136 = arith.cmpi ne, %135, %c0_i32_51 : i32
    scf.if %136 {
      %137 = vector.shape_cast %132 : vector<16x32xf32> to vector<2x8x32xf32>
      %138 = vector.extract_strided_slice %137 {offsets = [0, 6, 0], sizes = [2, 1, 32], strides = [1, 1, 1]} : vector<2x8x32xf32> to vector<2x1x32xf32>
      %139 = vector.shape_cast %138 : vector<2x1x32xf32> to vector<2x32xf32>
      %c0_52 = arith.constant 0 : index
      %c0_53 = arith.constant 0 : index
      %140 = vector.load %arg12[%c0_52, %c0_53] : memref<2x32xf32, #tpu.memory_space<vmem>>, vector<1x32xf32>
      %c1_54 = arith.constant 1 : index
      %c0_55 = arith.constant 0 : index
      %141 = vector.load %arg12[%c1_54, %c0_55] : memref<2x32xf32, #tpu.memory_space<vmem>>, vector<1x32xf32>
      %cst_56 = arith.constant dense<0.000000e+00> : vector<2xf32>
      %142 = vector.multi_reduction <add>, %139, %cst_56 [1] : vector<2x32xf32> to vector<2xf32>
      %143 = vector.shape_cast %142 : vector<2xf32> to vector<2x1xf32>
      %cst_57 = arith.constant 3.200000e+01 : f32
      %144 = vector.broadcast %cst_57 : f32 to vector<2x1xf32>
      %145 = arith.divf %143, %144 : vector<2x1xf32>
      %146 = vector.broadcast %145 : vector<2x1xf32> to vector<2x32xf32>
      %147 = arith.subf %139, %146 : vector<2x32xf32>
      %148 = arith.mulf %147, %147 : vector<2x32xf32>
      %cst_58 = arith.constant dense<0.000000e+00> : vector<2xf32>
      %149 = vector.multi_reduction <add>, %148, %cst_58 [1] : vector<2x32xf32> to vector<2xf32>
      %150 = vector.shape_cast %149 : vector<2xf32> to vector<2x1xf32>
      %cst_59 = arith.constant 3.200000e+01 : f32
      %151 = vector.broadcast %cst_59 : f32 to vector<2x1xf32>
      %152 = arith.divf %150, %151 : vector<2x1xf32>
      %153 = vector.broadcast %145 : vector<2x1xf32> to vector<2x32xf32>
      %154 = arith.subf %139, %153 : vector<2x32xf32>
      %cst_60 = arith.constant 9.99999974E-6 : f32
      %155 = vector.broadcast %cst_60 : f32 to vector<2x1xf32>
      %156 = arith.addf %152, %155 : vector<2x1xf32>
      %157 = math.rsqrt %156 : vector<2x1xf32>
      %158 = vector.broadcast %157 : vector<2x1xf32> to vector<2x32xf32>
      %159 = arith.mulf %154, %158 : vector<2x32xf32>
      %160 = vector.broadcast %140 : vector<1x32xf32> to vector<2x32xf32>
      %161 = arith.mulf %159, %160 : vector<2x32xf32>
      %162 = vector.broadcast %141 : vector<1x32xf32> to vector<2x32xf32>
      %163 = arith.addf %161, %162 : vector<2x32xf32>
      %164 = arith.truncf %163 : vector<2x32xf32> to vector<2x32xbf16>
      %c0_61 = arith.constant 0 : index
      %c0_62 = arith.constant 0 : index
      %165 = vector.load %arg13[%c0_61, %c0_62] : memref<32x128xbf16, #tpu.memory_space<vmem>>, vector<32x128xbf16>
      %cst_63 = arith.constant dense<0.000000e+00> : vector<2x128xf32>
      %166 = tpu.matmul %164, %165, %cst_63 {dimension_numbers = #tpu.dot_dimension_numbers<[1], [0], [0], [1], [0, 0, 1, 1], [], []>} : vector<2x32xbf16>, vector<32x128xbf16>, vector<2x128xf32> -> vector<2x128xf32>
      %c0_64 = arith.constant 0 : index
      %c0_65 = arith.constant 0 : index
      %167 = vector.load %arg14[%c0_64, %c0_65] : memref<1x128xf32, #tpu.memory_space<vmem>>, vector<1x128xf32>
      %168 = vector.broadcast %167 : vector<1x128xf32> to vector<2x128xf32>
      %169 = arith.addf %166, %168 : vector<2x128xf32>
      %c0_66 = arith.constant 0 : index
      %c0_67 = arith.constant 0 : index
      %170 = vector.load %arg15[%c0_66, %c0_67] : memref<2x128xf32, #tpu.memory_space<vmem>>, vector<2x128xf32>
      tpu.vector_store %arg15[%c0_66, %c0_67], %169 {strides = array<i32>} : memref<2x128xf32, #tpu.memory_space<vmem>>, vector<2x128xf32>,
    } else {
    }
    return
  }
  func.func @transform_0(%arg0: i32, %arg1: i32) -> (i32, i32, i32) {
    %c0_i32 = arith.constant 0 : i32
    %c0_i32_0 = arith.constant 0 : i32
    %c0_i32_1 = arith.constant 0 : i32
    return %arg0, %c0_i32, %c0_i32_0 : i32, i32, i32
  }
  func.func @transform_1(%arg0: i32, %arg1: i32) -> (i32, i32) {
    %c0_i32 = arith.constant 0 : i32
    %c0_i32_0 = arith.constant 0 : i32
    %c0_i32_1 = arith.constant 0 : i32
    return %c0_i32, %c0_i32_0 : i32, i32
  }
  func.func @transform_2(%arg0: i32, %arg1: i32) -> (i32, i32) {
    %c0_i32 = arith.constant 0 : i32
    %c0_i32_0 = arith.constant 0 : i32
    %c0_i32_1 = arith.constant 0 : i32
    return %c0_i32, %c0_i32_0 : i32, i32
  }
  func.func @transform_3(%arg0: i32, %arg1: i32) -> (i32, i32) {
    %c0_i32 = arith.constant 0 : i32
    %c0_i32_0 = arith.constant 0 : i32
    %c0_i32_1 = arith.constant 0 : i32
    return %c0_i32, %c0_i32_0 : i32, i32
  }
  func.func @transform_4(%arg0: i32, %arg1: i32) -> (i32, i32) {
    %c0_i32 = arith.constant 0 : i32
    %c0_i32_0 = arith.constant 0 : i32
    %c0_i32_1 = arith.constant 0 : i32
    return %c0_i32, %c0_i32_0 : i32, i32
  }
  func.func @transform_5(%arg0: i32, %arg1: i32) -> (i32, i32, i32, i32) {
    %c0_i32 = arith.constant 0 : i32
    %c0_i32_0 = arith.constant 0 : i32
    %c0_i32_1 = arith.constant 0 : i32
    %c0_i32_2 = arith.constant 0 : i32
    return %arg1, %c0_i32, %c0_i32_0, %c0_i32_1 : i32, i32, i32, i32
  }
  func.func @transform_6(%arg0: i32, %arg1: i32) -> (i32, i32, i32) {
    %c0_i32 = arith.constant 0 : i32
    %c0_i32_0 = arith.constant 0 : i32
    %c0_i32_1 = arith.constant 0 : i32
    return %arg1, %c0_i32, %c0_i32_0 : i32, i32, i32
  }
  func.func @transform_7(%arg0: i32, %arg1: i32) -> (i32, i32, i32) {
    %c0_i32 = arith.constant 0 : i32
    %c0_i32_0 = arith.constant 0 : i32
    %c0_i32_1 = arith.constant 0 : i32
    return %arg1, %c0_i32, %c0_i32_0 : i32, i32, i32
  }
  func.func @transform_8(%arg0: i32, %arg1: i32) -> (i32, i32, i32) {
    %c0_i32 = arith.constant 0 : i32
    %c0_i32_0 = arith.constant 0 : i32
    %c0_i32_1 = arith.constant 0 : i32
    return %arg1, %c0_i32, %c0_i32_0 : i32, i32, i32
  }
  func.func @transform_9(%arg0: i32, %arg1: i32) -> (i32, i32, i32) {
    %c0_i32 = arith.constant 0 : i32
    %c0_i32_0 = arith.constant 0 : i32
    %c0_i32_1 = arith.constant 0 : i32
    return %arg1, %c0_i32, %c0_i32_0 : i32, i32, i32
  }
  func.func @transform_10(%arg0: i32, %arg1: i32) -> (i32, i32) {
    %c0_i32 = arith.constant 0 : i32
    %c0_i32_0 = arith.constant 0 : i32
    %c0_i32_1 = arith.constant 0 : i32
    return %c0_i32, %c0_i32_0 : i32, i32
  }
  func.func @transform_11(%arg0: i32, %arg1: i32) -> (i32, i32) {
    %c0_i32 = arith.constant 0 : i32
    %c0_i32_0 = arith.constant 0 : i32
    %c0_i32_1 = arith.constant 0 : i32
    return %c0_i32, %c0_i32_0 : i32, i32
  }
  func.func @transform_12(%arg0: i32, %arg1: i32) -> (i32, i32) {
    %c0_i32 = arith.constant 0 : i32
    %c0_i32_0 = arith.constant 0 : i32
    %c0_i32_1 = arith.constant 0 : i32
    return %c0_i32, %c0_i32_0 : i32, i32
  }
  func.func @transform_13(%arg0: i32, %arg1: i32) -> (i32, i32) {
    %c0_i32 = arith.constant 0 : i32
    %c0_i32_0 = arith.constant 0 : i32
    return %arg0, %c0_i32 : i32, i32
  }
}

</mosaic_0001>

<llo_original>
// kernel: tpu_custom_call.1
$region0: #{tpu_custom_call.1}
  #allocation0 [shape = 'u32[]', space=smem, size = 0x4, offset = 0x4, fixed_abs, tag = 'smem constant byte address 0x4 - core index']
  #allocation1 [shape = 'u32[144,128]{1,0:T(1,128)}', space=vmem, size = 0x12000, scoped, tag = 'internal scratch']
  #allocation2 [shape = 'f32[16,32]{1,0:T(8,128)}', space=vmem, size = 0x2000, scoped, tag = 'scratch operand']
  %s0 = inlined_call_operand.vmem [shape: f32[2,8,4], index: 0, kind: input, shape index: {}]
  %s1 = inlined_call_operand.vmem [shape: bf16[4,32], index: 1, kind: input, shape index: {}]
  %s2 = inlined_call_operand.vmem [shape: f32[1,32], index: 2, kind: input, shape index: {}]
  %s3 = inlined_call_operand.vmem [shape: f32[16,32], index: 3, kind: input, shape index: {}]
  %s4 = inlined_call_operand.hbm [shape: f32[8,8], index: 4, kind: input, shape index: {}]
  %s5 = inlined_call_operand.vmem [shape: bf16[2,3,32,32], index: 5, kind: input, shape index: {}]
  %s6 = inlined_call_operand.vmem [shape: bf16[2,32,32], index: 6, kind: input, shape index: {}]
  %s7 = inlined_call_operand.vmem [shape: bf16[2,32,128], index: 7, kind: input, shape index: {}]
  %s8 = inlined_call_operand.vmem [shape: bf16[2,128,32], index: 8, kind: input, shape index: {}]
  %s9 = inlined_call_operand.vmem [shape: f32[2,10,128], index: 9, kind: input, shape index: {}]
  %s10 = inlined_call_operand.vmem [shape: f32[2,32], index: 10, kind: input, shape index: {}]
  %s11 = inlined_call_operand.vmem [shape: bf16[32,128], index: 11, kind: input, shape index: {}]
  %s12 = inlined_call_operand.vmem [shape: f32[1,128], index: 12, kind: input, shape index: {}]
  %s13 = inlined_call_operand.hbm [shape: f32[2,128], index: 13, kind: output, shape index: {}]
  %s14 = sld [smem:[#allocation0]]
  $region97: #{tpu_custom_call.1} parent=0
    _
  %s16 = ssub.s32 1, %s14
  %s17 = scalar_select 0, %s16, %s14
  $region1: #{tpu_custom_call.1} parent=0
    #allocation3 [shape = 'u8[4096]{0}', space=vmem, size = 0x1000, scoped, tag = 'input window, operand 4, single buffered']
    #allocation4 [shape = 's32[2]{0}', space=sflag, size = 0x8, scoped, tag = 'scoped memory for tpu_custom_call.1']
    #allocation5 [shape = 's32[2]{0}', space=sflag, size = 0x8, scoped, tag = 'scoped memory for tpu_custom_call.1']
    #allocation6 [shape = 'u8[1024]{0}', space=vmem, size = 0x400, scoped, tag = 'output window, operand 0, single buffered']
    %18 = vsyncpa [#allocation4], 0
    %19 = vsyncpa [#allocation5], 0
    loop: start=0, step=1, limit=4
    $region2: #{tpu_custom_call.1} parent=1 // loop_pre_header
      _
    $region3: #{tpu_custom_call.1} parent=1 // loop_header
      %s21 = sphi 0, %s25
      %p22 = scmp.ge.s32.totalorder %s21, 4
      %s28 = sphi 0, %s40
      %s29 = sphi 0, %s36
      %s30 = sphi 0, %s28
      %s31 = sphi 0, %s29
      %s32 = sphi 0, %s30
      %s33 = sphi 0, %s31
      %s43 = sphi 0, %s45
      %s46 = sphi 0, %s43
      %s47 = sphi 0, %s46
      %s63 = sphi 0, %s47
      %s67 = sphi 0, %s67
      %s69 = sphi 0, %s67
      %s70 = sphi 0, %s69
      %s84 = sphi 0, %s70
      %s88 = sphi 0, %s88
      %s90 = sphi 0, %s88
      %s91 = sphi 0, %s90
      %s105 = sphi 0, %s91
      %s109 = sphi 0, %s109
      %s111 = sphi 0, %s109
      %s112 = sphi 0, %s111
      %s126 = sphi 0, %s112
      %s130 = sphi 0, %s130
      %s132 = sphi 0, %s130
      %s133 = sphi 0, %s132
      %s147 = sphi 0, %s133
      %s153 = sphi 0, %s155
      %s156 = sphi 0, %s153
      %s157 = sphi 0, %s156
      %s173 = sphi 0, %s157
      %s179 = sphi 0, %s181
      %s182 = sphi 0, %s179
      %s183 = sphi 0, %s182
      %s199 = sphi 0, %s183
      %s205 = sphi 0, %s207
      %s208 = sphi 0, %s205
      %s209 = sphi 0, %s208
      %s225 = sphi 0, %s209
      %s231 = sphi 0, %s233
      %s234 = sphi 0, %s231
      %s235 = sphi 0, %s234
      %s251 = sphi 0, %s235
      %s257 = sphi 0, %s259
      %s260 = sphi 0, %s257
      %s261 = sphi 0, %s260
      %s277 = sphi 0, %s261
      %s281 = sphi 0, %s281
      %s283 = sphi 0, %s281
      %s284 = sphi 0, %s283
      %s298 = sphi 0, %s284
      %s302 = sphi 0, %s302
      %s304 = sphi 0, %s302
      %s305 = sphi 0, %s304
      %s319 = sphi 0, %s305
      %s323 = sphi 0, %s323
      %s325 = sphi 0, %s323
      %s326 = sphi 0, %s325
      %s340 = sphi 0, %s326
      %s346 = sphi 0, %s348
      %s349 = sphi 0, %s346
      %s350 = sphi 0, %s349
      %s366 = sphi 0, %s350
    $region4: #{tpu_custom_call.1} parent=1 // loop_header_branch
      %24 = sbr.rel (%p22) target = $region8
    $region5: #{tpu_custom_call.1} parent=1 // loop_body
      %s26 = ssub.s32 %s21, 1
      %s27 = ssub.s32 %s21, 2
      %s34 = sadd.s32 1, %s29
      %p35 = scmp.ge.s32.totalorder %s34, 2
      %s36 = scalar_select %p35, 0, %s34
      %s37 = sadd.s32 1, %s28
      %s38 = scalar_select %p35, %s37, %s28
      %p39 = scmp.ge.s32.totalorder %s38, 1
      %s40 = scalar_select %p39, 0, %s38
      %s41 = ssub.s32 %s28, %s40
      %p42 = scmp.eq.s32.totalorder %s41, 0
      %s44 = sadd.s32 %s43, 1
      %s45 = scalar_select %p42, %s43, %s44
      %p48 = pneg %p42
      %p49 = scmp.eq.s32.totalorder %s21, 1
      %p50 = por %p48, %p49
      %p51 = scmp.ne.s32.totalorder %s43, %s46
      %p52 = scmp.eq.s32.totalorder %s21, 0
      %p53 = por %p51, %p52
      %p54 = scmp.ne.s32.totalorder %s43, %s46
      %p55 = scmp.eq.s32.totalorder %s26, 1
      %p56 = por %p54, %p55
      %p57 = scmp.ne.s32.totalorder %s46, %s47
      %p58 = scmp.eq.s32.totalorder %s26, 0
      %p59 = por %p57, %p58
      %p60 = scmp.ne.s32.totalorder %s46, %s47
      %p61 = scmp.eq.s32.totalorder %s27, 1
      %p62 = por %p60, %p61
      %p64 = scmp.ne.s32.totalorder %s47, %s63
      %p65 = scmp.eq.s32.totalorder %s27, 0
      %p66 = por %p64, %p65
      %s68 = sadd.s32 %s67, 1
      %p71 = scmp.eq.s32.totalorder %s21, 1
      %p72 = scmp.ne.s32.totalorder %s67, %s69
      %p73 = scmp.eq.s32.totalorder %s21, 0
      %p74 = por %p72, %p73
      %p75 = scmp.ne.s32.totalorder %s67, %s69
      %p76 = scmp.eq.s32.totalorder %s26, 1
      %p77 = por %p75, %p76
      %p78 = scmp.ne.s32.totalorder %s69, %s70
      %p79 = scmp.eq.s32.totalorder %s26, 0
      %p80 = por %p78, %p79
      %p81 = scmp.ne.s32.totalorder %s69, %s70
      %p82 = scmp.eq.s32.totalorder %s27, 1
      %p83 = por %p81, %p82
      %p85 = scmp.ne.s32.totalorder %s70, %s84
      %p86 = scmp.eq.s32.totalorder %s27, 0
      %p87 = por %p85, %p86
      %s89 = sadd.s32 %s88, 1
      %p92 = scmp.eq.s32.totalorder %s21, 1
      %p93 = scmp.ne.s32.totalorder %s88, %s90
      %p94 = scmp.eq.s32.totalorder %s21, 0
      %p95 = por %p93, %p94
      %p96 = scmp.ne.s32.totalorder %s88, %s90
      %p97 = scmp.eq.s32.totalorder %s26, 1
      %p98 = por %p96, %p97
      %p99 = scmp.ne.s32.totalorder %s90, %s91
      %p100 = scmp.eq.s32.totalorder %s26, 0
      %p101 = por %p99, %p100
      %p102 = scmp.ne.s32.totalorder %s90, %s91
      %p103 = scmp.eq.s32.totalorder %s27, 1
      %p104 = por %p102, %p103
      %p106 = scmp.ne.s32.totalorder %s91, %s105
      %p107 = scmp.eq.s32.totalorder %s27, 0
      %p108 = por %p106, %p107
      %s110 = sadd.s32 %s109, 1
      %p113 = scmp.eq.s32.totalorder %s21, 1
      %p114 = scmp.ne.s32.totalorder %s109, %s111
      %p115 = scmp.eq.s32.totalorder %s21, 0
      %p116 = por %p114, %p115
      %p117 = scmp.ne.s32.totalorder %s109, %s111
      %p118 = scmp.eq.s32.totalorder %s26, 1
      %p119 = por %p117, %p118
      %p120 = scmp.ne.s32.totalorder %s111, %s112
      %p121 = scmp.eq.s32.totalorder %s26, 0
      %p122 = por %p120, %p121
      %p123 = scmp.ne.s32.totalorder %s111, %s112
      %p124 = scmp.eq.s32.totalorder %s27, 1
      %p125 = por %p123, %p124
      %p127 = scmp.ne.s32.totalorder %s112, %s126
      %p128 = scmp.eq.s32.totalorder %s27, 0
      %p129 = por %p127, %p128
      %s131 = sadd.s32 %s130, 1
      %p134 = scmp.eq.s32.totalorder %s21, 1
      %p135 = scmp.ne.s32.totalorder %s130, %s132
      %p136 = scmp.eq.s32.totalorder %s21, 0
      %p137 = por %p135, %p136
      %p138 = scmp.ne.s32.totalorder %s130, %s132
      %p139 = scmp.eq.s32.totalorder %s26, 1
      %p140 = por %p138, %p139
      %p141 = scmp.ne.s32.totalorder %s132, %s133
      %p142 = scmp.eq.s32.totalorder %s26, 0
      %p143 = por %p141, %p142
      %p144 = scmp.ne.s32.totalorder %s132, %s133
      %p145 = scmp.eq.s32.totalorder %s27, 1
      %p146 = por %p144, %p145
      %p148 = scmp.ne.s32.totalorder %s133, %s147
      %p149 = scmp.eq.s32.totalorder %s27, 0
      %p150 = por %p148, %p149
      %s151 = ssub.s32 %s29, %s36
      %p152 = scmp.eq.s32.totalorder %s151, 0
      %s154 = sadd.s32 %s153, 1
      %s155 = scalar_select %p152, %s153, %s154
      %p158 = pneg %p152
      %p159 = scmp.eq.s32.totalorder %s21, 1
      %p160 = por %p158, %p159
      %p161 = scmp.ne.s32.totalorder %s153, %s156
      %p162 = scmp.eq.s32.totalorder %s21, 0
      %p163 = por %p161, %p162
      %p164 = scmp.ne.s32.totalorder %s153, %s156
      %p165 = scmp.eq.s32.totalorder %s26, 1
      %p166 = por %p164, %p165
      %p167 = scmp.ne.s32.totalorder %s156, %s157
      %p168 = scmp.eq.s32.totalorder %s26, 0
      %p169 = por %p167, %p168
      %p170 = scmp.ne.s32.totalorder %s156, %s157
      %p171 = scmp.eq.s32.totalorder %s27, 1
      %p172 = por %p170, %p171
      %p174 = scmp.ne.s32.totalorder %s157, %s173
      %p175 = scmp.eq.s32.totalorder %s27, 0
      %p176 = por %p174, %p175
      %s177 = ssub.s32 %s29, %s36
      %p178 = scmp.eq.s32.totalorder %s177, 0
      %s180 = sadd.s32 %s179, 1
      %s181 = scalar_select %p178, %s179, %s180
      %p184 = pneg %p178
      %p185 = scmp.eq.s32.totalorder %s21, 1
      %p186 = por %p184, %p185
      %p187 = scmp.ne.s32.totalorder %s179, %s182
      %p188 = scmp.eq.s32.totalorder %s21, 0
      %p189 = por %p187, %p188
      %p190 = scmp.ne.s32.totalorder %s179, %s182
      %p191 = scmp.eq.s32.totalorder %s26, 1
      %p192 = por %p190, %p191
      %p193 = scmp.ne.s32.totalorder %s182, %s183
      %p194 = scmp.eq.s32.totalorder %s26, 0
      %p195 = por %p193, %p194
      %p196 = scmp.ne.s32.totalorder %s182, %s183
      %p197 = scmp.eq.s32.totalorder %s27, 1
      %p198 = por %p196, %p197
      %p200 = scmp.ne.s32.totalorder %s183, %s199
      %p201 = scmp.eq.s32.totalorder %s27, 0
      %p202 = por %p200, %p201
      %s203 = ssub.s32 %s29, %s36
      %p204 = scmp.eq.s32.totalorder %s203, 0
      %s206 = sadd.s32 %s205, 1
      %s207 = scalar_select %p204, %s205, %s206
      %p210 = pneg %p204
      %p211 = scmp.eq.s32.totalorder %s21, 1
      %p212 = por %p210, %p211
      %p213 = scmp.ne.s32.totalorder %s205, %s208
      %p214 = scmp.eq.s32.totalorder %s21, 0
      %p215 = por %p213, %p214
      %p216 = scmp.ne.s32.totalorder %s205, %s208
      %p217 = scmp.eq.s32.totalorder %s26, 1
      %p218 = por %p216, %p217
      %p219 = scmp.ne.s32.totalorder %s208, %s209
      %p220 = scmp.eq.s32.totalorder %s26, 0
      %p221 = por %p219, %p220
      %p222 = scmp.ne.s32.totalorder %s208, %s209
      %p223 = scmp.eq.s32.totalorder %s27, 1
      %p224 = por %p222, %p223
      %p226 = scmp.ne.s32.totalorder %s209, %s225
      %p227 = scmp.eq.s32.totalorder %s27, 0
      %p228 = por %p226, %p227
      %s229 = ssub.s32 %s29, %s36
      %p230 = scmp.eq.s32.totalorder %s229, 0
      %s232 = sadd.s32 %s231, 1
      %s233 = scalar_select %p230, %s231, %s232
      %p236 = pneg %p230
      %p237 = scmp.eq.s32.totalorder %s21, 1
      %p238 = por %p236, %p237
      %p239 = scmp.ne.s32.totalorder %s231, %s234
      %p240 = scmp.eq.s32.totalorder %s21, 0
      %p241 = por %p239, %p240
      %p242 = scmp.ne.s32.totalorder %s231, %s234
      %p243 = scmp.eq.s32.totalorder %s26, 1
      %p244 = por %p242, %p243
      %p245 = scmp.ne.s32.totalorder %s234, %s235
      %p246 = scmp.eq.s32.totalorder %s26, 0
      %p247 = por %p245, %p246
      %p248 = scmp.ne.s32.totalorder %s234, %s235
      %p249 = scmp.eq.s32.totalorder %s27, 1
      %p250 = por %p248, %p249
      %p252 = scmp.ne.s32.totalorder %s235, %s251
      %p253 = scmp.eq.s32.totalorder %s27, 0
      %p254 = por %p252, %p253
      %s255 = ssub.s32 %s29, %s36
      %p256 = scmp.eq.s32.totalorder %s255, 0
      %s258 = sadd.s32 %s257, 1
      %s259 = scalar_select %p256, %s257, %s258
      %p262 = pneg %p256
      %p263 = scmp.eq.s32.totalorder %s21, 1
      %p264 = por %p262, %p263
      %p265 = scmp.ne.s32.totalorder %s257, %s260
      %p266 = scmp.eq.s32.totalorder %s21, 0
      %p267 = por %p265, %p266
      %p268 = scmp.ne.s32.totalorder %s257, %s260
      %p269 = scmp.eq.s32.totalorder %s26, 1
      %p270 = por %p268, %p269
      %p271 = scmp.ne.s32.totalorder %s260, %s261
      %p272 = scmp.eq.s32.totalorder %s26, 0
      %p273 = por %p271, %p272
      %p274 = scmp.ne.s32.totalorder %s260, %s261
      %p275 = scmp.eq.s32.totalorder %s27, 1
      %p276 = por %p274, %p275
      %p278 = scmp.ne.s32.totalorder %s261, %s277
      %p279 = scmp.eq.s32.totalorder %s27, 0
      %p280 = por %p278, %p279
      %s282 = sadd.s32 %s281, 1
      %p285 = scmp.eq.s32.totalorder %s21, 1
      %p286 = scmp.ne.s32.totalorder %s281, %s283
      %p287 = scmp.eq.s32.totalorder %s21, 0
      %p288 = por %p286, %p287
      %p289 = scmp.ne.s32.totalorder %s281, %s283
      %p290 = scmp.eq.s32.totalorder %s26, 1
      %p291 = por %p289, %p290
      %p292 = scmp.ne.s32.totalorder %s283, %s284
      %p293 = scmp.eq.s32.totalorder %s26, 0
      %p294 = por %p292, %p293
      %p295 = scmp.ne.s32.totalorder %s283, %s284
      %p296 = scmp.eq.s32.totalorder %s27, 1
      %p297 = por %p295, %p296
      %p299 = scmp.ne.s32.totalorder %s284, %s298
      %p300 = scmp.eq.s32.totalorder %s27, 0
      %p301 = por %p299, %p300
      %s303 = sadd.s32 %s302, 1
      %p306 = scmp.eq.s32.totalorder %s21, 1
      %p307 = scmp.ne.s32.totalorder %s302, %s304
      %p308 = scmp.eq.s32.totalorder %s21, 0
      %p309 = por %p307, %p308
      %p310 = scmp.ne.s32.totalorder %s302, %s304
      %p311 = scmp.eq.s32.totalorder %s26, 1
      %p312 = por %p310, %p311
      %p313 = scmp.ne.s32.totalorder %s304, %s305
      %p314 = scmp.eq.s32.totalorder %s26, 0
      %p315 = por %p313, %p314
      %p316 = scmp.ne.s32.totalorder %s304, %s305
      %p317 = scmp.eq.s32.totalorder %s27, 1
      %p318 = por %p316, %p317
      %p320 = scmp.ne.s32.totalorder %s305, %s319
      %p321 = scmp.eq.s32.totalorder %s27, 0
      %p322 = por %p320, %p321
      %s324 = sadd.s32 %s323, 1
      %p327 = scmp.eq.s32.totalorder %s21, 1
      %p328 = scmp.ne.s32.totalorder %s323, %s325
      %p329 = scmp.eq.s32.totalorder %s21, 0
      %p330 = por %p328, %p329
      %p331 = scmp.ne.s32.totalorder %s323, %s325
      %p332 = scmp.eq.s32.totalorder %s26, 1
      %p333 = por %p331, %p332
      %p334 = scmp.ne.s32.totalorder %s325, %s326
      %p335 = scmp.eq.s32.totalorder %s26, 0
      %p336 = por %p334, %p335
      %p337 = scmp.ne.s32.totalorder %s325, %s326
      %p338 = scmp.eq.s32.totalorder %s27, 1
      %p339 = por %p337, %p338
      %p341 = scmp.ne.s32.totalorder %s326, %s340
      %p342 = scmp.eq.s32.totalorder %s27, 0
      %p343 = por %p341, %p342
      %s344 = ssub.s32 %s28, %s40
      %p345 = scmp.eq.s32.totalorder %s344, 0
      %s347 = sadd.s32 %s346, 1
      %s348 = scalar_select %p345, %s346, %s347
      %p351 = pneg %p345
      %p352 = scmp.eq.s32.totalorder %s21, 1
      %p353 = por %p351, %p352
      %p354 = scmp.ne.s32.totalorder %s346, %s349
      %p355 = scmp.eq.s32.totalorder %s21, 0
      %p356 = por %p354, %p355
      %p357 = scmp.ne.s32.totalorder %s346, %s349
      %p358 = scmp.eq.s32.totalorder %s26, 1
      %p359 = por %p357, %p358
      %p360 = scmp.ne.s32.totalorder %s349, %s350
      %p361 = scmp.eq.s32.totalorder %s26, 0
      %p362 = por %p360, %p361
      %p363 = scmp.ne.s32.totalorder %s349, %s350
      %p364 = scmp.eq.s32.totalorder %s27, 1
      %p365 = por %p363, %p364
      %p367 = scmp.ne.s32.totalorder %s350, %s366
      %p368 = scmp.eq.s32.totalorder %s27, 0
      %p369 = por %p367, %p368
      %p370 = scmp.le.s32.totalorder 1, %s21
      %p371 = scmp.lt.s32.totalorder %s21, 3
      %p372 = pnand %p370, %p371
      %p373 = pneg %p372
      // Predicated region
      $region9: #{tpu_custom_call.1} parent=5 // pred_check
        _
      $region10: #{tpu_custom_call.1} parent=5 // pred_check_branch
        %375 = sbr.rel (%p372) target = $region12
      $region11: #{tpu_custom_call.1} parent=5 // pred_region
        %s376 = ssub.s32 %s21, 1
        // Predicated region
        $region13: #{tpu_custom_call.1} parent=11 // pred_check
          %p377 = pneg %p59
        $region14: #{tpu_custom_call.1} parent=11 // pred_check_branch
          %379 = sbr.rel (%p377) target = $region16
        $region15: #{tpu_custom_call.1} parent=11 // pred_region
          %s380 = smul.u32 2, %s30
          %p381 = scmp.lt.s32.totalorder %s380, 1
          %s382 = scalar_select %p381, %s380, 1
          %s383 = smul.addr %s382, 8
          %s384 = scalar_lea.vmem %s0, %s383
          %s385 = smul.u32 2, %s30
        $region16: #{tpu_custom_call.1} parent=11 // pred_fallthru
          _
        // Predicated region
        $region17: #{tpu_custom_call.1} parent=11 // pred_check
          %p386 = pneg %p80
        $region18: #{tpu_custom_call.1} parent=11 // pred_check_branch
          %388 = sbr.rel (%p386) target = $region20
        $region19: #{tpu_custom_call.1} parent=11 // pred_region
          _
        $region20: #{tpu_custom_call.1} parent=11 // pred_fallthru
          _
        // Predicated region
        $region21: #{tpu_custom_call.1} parent=11 // pred_check
          %p389 = pneg %p101
        $region22: #{tpu_custom_call.1} parent=11 // pred_check_branch
          %391 = sbr.rel (%p389) target = $region24
        $region23: #{tpu_custom_call.1} parent=11 // pred_region
          _
        $region24: #{tpu_custom_call.1} parent=11 // pred_fallthru
          _
        // Predicated region
        $region25: #{tpu_custom_call.1} parent=11 // pred_check
          %p392 = pneg %p122
        $region26: #{tpu_custom_call.1} parent=11 // pred_check_branch
          %394 = sbr.rel (%p392) target = $region28
        $region27: #{tpu_custom_call.1} parent=11 // pred_region
          _
        $region28: #{tpu_custom_call.1} parent=11 // pred_fallthru
          _
        // Predicated region
        $region29: #{tpu_custom_call.1} parent=11 // pred_check
          %p395 = pneg %p143
        $region30: #{tpu_custom_call.1} parent=11 // pred_check_branch
          %397 = sbr.rel (%p395) target = $region32
        $region31: #{tpu_custom_call.1} parent=11 // pred_region
          %s399 = ssub.s32 128, 128
          %400 = vsyncadd [#allocation4], %s399
          %s402 = sshll.u32 [#allocation3], 4
          %s403 = int_to_ptr.vmem [resolvable:$true] %s402
          %405 = dma.hbm_to_vmem [thread:$0]  %s4, 128, %s403, [#allocation4]
        $region32: #{tpu_custom_call.1} parent=11 // pred_fallthru
          _
        // Predicated region
        $region33: #{tpu_custom_call.1} parent=11 // pred_check
          %p406 = pneg %p294
        $region34: #{tpu_custom_call.1} parent=11 // pred_check_branch
          %408 = sbr.rel (%p406) target = $region36
        $region35: #{tpu_custom_call.1} parent=11 // pred_region
          _
        $region36: #{tpu_custom_call.1} parent=11 // pred_fallthru
          _
        // Predicated region
        $region37: #{tpu_custom_call.1} parent=11 // pred_check
          %p409 = pneg %p315
        $region38: #{tpu_custom_call.1} parent=11 // pred_check_branch
          %411 = sbr.rel (%p409) target = $region40
        $region39: #{tpu_custom_call.1} parent=11 // pred_region
          _
        $region40: #{tpu_custom_call.1} parent=11 // pred_fallthru
          _
        // Predicated region
        $region41: #{tpu_custom_call.1} parent=11 // pred_check
          %p412 = pneg %p336
        $region42: #{tpu_custom_call.1} parent=11 // pred_check_branch
          %414 = sbr.rel (%p412) target = $region44
        $region43: #{tpu_custom_call.1} parent=11 // pred_region
          _
        $region44: #{tpu_custom_call.1} parent=11 // pred_fallthru
          _
      $region12: #{tpu_custom_call.1} parent=5 // pred_fallthru
        _
      %p415 = scmp.lt.s32.totalorder %s21, 2
      // Predicated region
      $region45: #{tpu_custom_call.1} parent=5 // pred_check
        %p416 = pneg %p415
      $region46: #{tpu_custom_call.1} parent=5 // pred_check_branch
        %418 = sbr.rel (%p416) target = $region48
      $region47: #{tpu_custom_call.1} parent=5 // pred_region
        // Predicated region
        $region49: #{tpu_custom_call.1} parent=47 // pred_check
          %p419 = pneg %p163
        $region50: #{tpu_custom_call.1} parent=47 // pred_check_branch
          %421 = sbr.rel (%p419) target = $region52
        $region51: #{tpu_custom_call.1} parent=47 // pred_region
          %p422 = scmp.lt.s32.totalorder %s29, 1
          %s423 = scalar_select %p422, %s29, 1
          %s424 = smul.addr %s423, 12
          %s425 = smul.addr %s424, 4
          %s426 = scalar_lea.vmem %s5, %s425
        $region52: #{tpu_custom_call.1} parent=47 // pred_fallthru
          _
        // Predicated region
        $region53: #{tpu_custom_call.1} parent=47 // pred_check
          %p427 = pneg %p189
        $region54: #{tpu_custom_call.1} parent=47 // pred_check_branch
          %429 = sbr.rel (%p427) target = $region56
        $region55: #{tpu_custom_call.1} parent=47 // pred_region
          %p430 = scmp.lt.s32.totalorder %s29, 1
          %s431 = scalar_select %p430, %s29, 1
          %s432 = smul.addr %s431, 4
          %s433 = smul.addr %s432, 4
          %s434 = scalar_lea.vmem %s6, %s433
        $region56: #{tpu_custom_call.1} parent=47 // pred_fallthru
          _
        // Predicated region
        $region57: #{tpu_custom_call.1} parent=47 // pred_check
          %p435 = pneg %p215
        $region58: #{tpu_custom_call.1} parent=47 // pred_check_branch
          %437 = sbr.rel (%p435) target = $region60
        $region59: #{tpu_custom_call.1} parent=47 // pred_region
          %p438 = scmp.lt.s32.totalorder %s29, 1
          %s439 = scalar_select %p438, %s29, 1
          %s440 = smul.addr %s439, 4
          %s441 = smul.addr %s440, 4
          %s442 = scalar_lea.vmem %s7, %s441
        $region60: #{tpu_custom_call.1} parent=47 // pred_fallthru
          _
        // Predicated region
        $region61: #{tpu_custom_call.1} parent=47 // pred_check
          %p443 = pneg %p241
        $region62: #{tpu_custom_call.1} parent=47 // pred_check_branch
          %445 = sbr.rel (%p443) target = $region64
        $region63: #{tpu_custom_call.1} parent=47 // pred_region
          %p446 = scmp.lt.s32.totalorder %s29, 1
          %s447 = scalar_select %p446, %s29, 1
          %s448 = smul.addr %s447, 16
          %s449 = smul.addr %s448, 4
          %s450 = scalar_lea.vmem %s8, %s449
        $region64: #{tpu_custom_call.1} parent=47 // pred_fallthru
          _
        // Predicated region
        $region65: #{tpu_custom_call.1} parent=47 // pred_check
          %p451 = pneg %p267
        $region66: #{tpu_custom_call.1} parent=47 // pred_check_branch
          %453 = sbr.rel (%p451) target = $region68
        $region67: #{tpu_custom_call.1} parent=47 // pred_region
          %p454 = scmp.lt.s32.totalorder %s29, 1
          %s455 = scalar_select %p454, %s29, 1
          %s456 = smul.addr %s455, 2
          %s457 = smul.addr %s456, 8
          %s458 = scalar_lea.vmem %s9, %s457
        $region68: #{tpu_custom_call.1} parent=47 // pred_fallthru
          _
      $region48: #{tpu_custom_call.1} parent=5 // pred_fallthru
        _
      %p459 = scmp.le.s32.totalorder 1, %s21
      %p460 = scmp.lt.s32.totalorder %s21, 3
      %p461 = pnand %p459, %p460
      %p462 = pneg %p461
      // Predicated region
      $region69: #{tpu_custom_call.1} parent=5 // pred_check
        _
      $region70: #{tpu_custom_call.1} parent=5 // pred_check_branch
        %464 = sbr.rel (%p461) target = $region72
      $region71: #{tpu_custom_call.1} parent=5 // pred_region
        %s465 = ssub.s32 %s21, 1
        // Predicated region
        $region73: #{tpu_custom_call.1} parent=71 // pred_check
          %p466 = pneg %p143
        $region74: #{tpu_custom_call.1} parent=71 // pred_check_branch
          %468 = sbr.rel (%p466) target = $region76
        $region75: #{tpu_custom_call.1} parent=71 // pred_region
          %469 = dma.done [#allocation4], 128
        $region76: #{tpu_custom_call.1} parent=71 // pred_fallthru
          _
        %s470 = smul.u32 2, %s30
        %p471 = scmp.lt.s32.totalorder %s470, 1
        %s472 = scalar_select %p471, %s470, 1
        %s473 = smul.addr %s472, 8
        %s474 = scalar_lea.vmem %s0, %s473
        %p475 = pneg %p59
        %p476 = pneg %p56
        %p477 = pneg %p80
        %p478 = pneg %p77
        %p479 = pneg %p101
        %p480 = pneg %p98
        %p481 = pneg %p122
        %p482 = pneg %p119
        %p483 = pneg %p143
        %p484 = pneg %p140
        %p485 = scmp.lt.s32.totalorder %s31, 1
        %s486 = scalar_select %p485, %s31, 1
        %s487 = smul.addr %s486, 12
        %s488 = smul.addr %s487, 4
        %s489 = scalar_lea.vmem %s5, %s488
        %p490 = pneg %p169
        %p491 = pneg %p166
        %p492 = scmp.lt.s32.totalorder %s31, 1
        %s493 = scalar_select %p492, %s31, 1
        %s494 = smul.addr %s493, 4
        %s495 = smul.addr %s494, 4
        %s496 = scalar_lea.vmem %s6, %s495
        %p497 = pneg %p195
        %p498 = pneg %p192
        %p499 = scmp.lt.s32.totalorder %s31, 1
        %s500 = scalar_select %p499, %s31, 1
        %s501 = smul.addr %s500, 4
        %s502 = smul.addr %s501, 4
        %s503 = scalar_lea.vmem %s7, %s502
        %p504 = pneg %p221
        %p505 = pneg %p218
        %p506 = scmp.lt.s32.totalorder %s31, 1
        %s507 = scalar_select %p506, %s31, 1
        %s508 = smul.addr %s507, 16
        %s509 = smul.addr %s508, 4
        %s510 = scalar_lea.vmem %s8, %s509
        %p511 = pneg %p247
        %p512 = pneg %p244
        %p513 = scmp.lt.s32.totalorder %s31, 1
        %s514 = scalar_select %p513, %s31, 1
        %s515 = smul.addr %s514, 2
        %s516 = smul.addr %s515, 8
        %s517 = scalar_lea.vmem %s9, %s516
        %p518 = pneg %p273
        %p519 = pneg %p270
        %p520 = pneg %p294
        %p521 = pneg %p291
        %p522 = pneg %p315
        %p523 = pneg %p312
        %p524 = pneg %p336
        %p525 = pneg %p333
        %p526 = pneg %p362
        %p527 = pneg %p359
        %s528 = smul.u32 2, %s30
        %p529 = scmp.lt.s32.totalorder %s528, 1
        %s530 = scalar_select %p529, %s528, 1
        %s531 = smul.addr %s530, 8
        %s532 = scalar_lea.vmem %s0, %s531
        %s533 = smul.u32 2, %s30
        %p534 = scmp.lt.s32.totalorder %s31, 1
        %s535 = scalar_select %p534, %s31, 1
        %s536 = smul.addr %s535, 12
        %s537 = smul.addr %s536, 4
        %s538 = scalar_lea.vmem %s5, %s537
        %p539 = scmp.lt.s32.totalorder %s31, 1
        %s540 = scalar_select %p539, %s31, 1
        %s541 = smul.addr %s540, 4
        %s542 = smul.addr %s541, 4
        %s543 = scalar_lea.vmem %s6, %s542
        %p544 = scmp.lt.s32.totalorder %s31, 1
        %s545 = scalar_select %p544, %s31, 1
        %s546 = smul.addr %s545, 4
        %s547 = smul.addr %s546, 4
        %s548 = scalar_lea.vmem %s7, %s547
        %p549 = scmp.lt.s32.totalorder %s31, 1
        %s550 = scalar_select %p549, %s31, 1
        %s551 = smul.addr %s550, 16
        %s552 = smul.addr %s551, 4
        %s553 = scalar_lea.vmem %s8, %s552
        %p554 = scmp.lt.s32.totalorder %s31, 1
        %s555 = scalar_select %p554, %s31, 1
        %s556 = smul.addr %s555, 2
        %s557 = smul.addr %s556, 8
        %s558 = scalar_lea.vmem %s9, %s557
        %p560 = scmp.eq.s32.totalorder %s31, 0
        // Predicated region
        $region77: #{tpu_custom_call.1} parent=71 // pred_check
          %p561 = pneg %p560
        $region78: #{tpu_custom_call.1} parent=71 // pred_check_branch
          %563 = sbr.rel (%p561) target = $region80
        $region79: #{tpu_custom_call.1} parent=71 // pred_region
          %v564 = vld [vmem:[%s532] sm:$0xff]
          %v565 = vld [vmem:[%s532 + $0x8] sm:$0xff]
          %v566 = vpack.c.bf16 %v565, %v564
          %v567 = vld [vmem:[%s1] sm:$0x3]
          %v568 = vld [vmem:[%s2] sm:$0x1]
          %v570 = vlaneseq
          %v571 = vshrl.u32 %v570, 7
          %v572 = vsub.s32 0, %v571
          %v573 = vrot.slane %v568, %v572
          %vm575 = vcmask 31744
          %v577 = vsel %vm575, %v566, 0
          %vm579 = vcmask 1041408
          %v581 = vsel %vm579, %v567, 0
          %583 = vmatprep.subr.bf16.mxu0 0
          %584 = vmatpush1.bf16.msra.mxu0 %v581
          %585 = vmatprep.subr.bf16.mxu0 0
          %586 = vmatpush1.bf16.msra.mxu0 0
          %587 = vmatprep.subr.bf16.mxu0 0
          %588 = vmatpush1.bf16.msra.mxu0 0
          %589 = vmatprep.subr.bf16.mxu0 0
          %590 = vmatpush1.bf16.msra.mxu0 0
          %591 = vmatprep.subr.bf16.mxu0 0
          %592 = vmatpush1.bf16.msra.mxu0 0
          %593 = vmatprep.subr.bf16.mxu0 0
          %594 = vmatpush1.bf16.msra.mxu0 0
          %595 = vmatprep.subr.bf16.mxu0 0
          %596 = vmatpush1.bf16.msra.mxu0 0
          %597 = vmatprep.subr.bf16.mxu0 0
          %598 = vmatpush1.bf16.msra.mxu0 0
          %599 = vmatprep.subr.bf16.mxu0 0
          %600 = vmatpush1.bf16.msra.mxu0 0
          %601 = vmatprep.subr.bf16.mxu0 0
          %602 = vmatpush1.bf16.msra.mxu0 0
          %603 = vmatprep.subr.bf16.mxu0 0
          %604 = vmatpush1.bf16.msra.mxu0 0
          %605 = vmatprep.subr.bf16.mxu0 0
          %606 = vmatpush1.bf16.msra.mxu0 0
          %607 = vmatprep.subr.bf16.mxu0 0
          %608 = vmatpush1.bf16.msra.mxu0 0
          %609 = vmatprep.subr.bf16.mxu0 0
          %610 = vmatpush1.bf16.msra.mxu0 0
          %611 = vmatprep.subr.bf16.mxu0 0
          %612 = vmatpush1.bf16.msra.mxu0 0
          %613 = vmatprep.subr.bf16.mxu0 0
          %614 = vmatpush1.bf16.msra.mxu0 0
          %615 = vmatprep.mubr.bf16.mxu0 0
          %616 = vmatmul.mubr.bf16.gmra.mrb[0].mxu0 %v577
          %v617 = vpop.f32.mrb[0].mxu0
          %v618 = vadd.f32 %v573, %v617
          %v619 = vpop.f32.mrb[0].mxu0
          %v620 = vpop.f32.mrb[0].mxu0
          %v621 = vadd.f32 %v573, %v620
          %v622 = vpop.f32.mrb[0].mxu0
          %623 = vdwg.mxu0
          %v624 = vld [vmem:[%s3] sm:$0xff]
          %v625 = vld [vmem:[%s3 + $0x8] sm:$0xff]
          %v626 = vadd.f32 %v618, %v624
          %v627 = vadd.f32 %v621, %v625
          %vm628 = vcmask 261120
          %629 = vst.msk [vmem:[#allocation2] sm:$0xff] %vm628, %v626
          %630 = vst.msk [vmem:[#allocation2 + $0x8] sm:$0xff] %vm628, %v627
        $region80: #{tpu_custom_call.1} parent=71 // pred_fallthru
          _
        %v631 = vld [vmem:[#allocation2] sm:$0xff]
        %v632 = vld [vmem:[#allocation2 + $0x8] sm:$0xff]
        %v633 = vld [vmem:[%s558] sm:$0xff]
        %v634 = vld [vmem:[%s558 + $0x8] sm:$0x3]
        %vm635 = vcmask 261120
        %v636 = vsel %vm635, %v631, 0.0
        %637 = vadd.xlane.f32.xlu0 %v636
        %v638 = vpop.xlane.xlu0 %637
        %v639 = vsel %vm635, %v632, 0.0
        %640 = vadd.xlane.f32.xlu0 %v639
        %v641 = vpop.xlane.xlu0 %640
        %v642 = vrcp.pop 32.0
        %v643 = vmul.f32 %v638, %v642
        %v644 = vmul.f32 %v641, %v642
        %v645 = vsub.f32 %v631, %v643
        %v646 = vsub.f32 %v632, %v644
        %v647 = vmul.f32 %v645, %v645
        %v648 = vmul.f32 %v646, %v646
        %v649 = vsel %vm635, %v647, 0.0
        %650 = vadd.xlane.f32.xlu0 %v649
        %v651 = vpop.xlane.xlu0 %650
        %v652 = vsel %vm635, %v648, 0.0
        %653 = vadd.xlane.f32.xlu0 %v652
        %v654 = vpop.xlane.xlu0 %653
        %v655 = vmul.f32 %v651, %v642
        %v656 = vmul.f32 %v654, %v642
        %v657 = vadd.f32 %v655, 1e-05
        %v658 = vadd.f32 %v656, 1e-05
        %v659 = vrsqrt.pop %v657
        %v660 = vrsqrt.pop %v658
        %v661 = vmul.f32 %v645, %v659
        %v662 = vmul.f32 %v646, %v660
        %v663 = vlaneseq
        %v664 = vshrl.u32 %v663, 7
        %v665 = vsub.s32 0, %v664
        %v666 = vrot.slane %v633, %v665
        %v667 = vmul.f32 %v661, %v666
        %v668 = vmul.f32 %v662, %v666
        %v669 = vlaneseq
        %v670 = vshrl.u32 %v669, 7
        %v671 = vsub.s32 1, %v670
        %v672 = vrot.slane %v633, %v671
        %v673 = vadd.f32 %v667, %v672
        %v674 = vadd.f32 %v668, %v672
        %v675 = vpack.c.bf16 %v674, %v673
        %v676 = vld [vmem:[%s538] sm:$0xf]
        %v677 = vld [vmem:[%s538 + $0x4] sm:$0xf]
        %v678 = vld [vmem:[%s538 + $0x8] sm:$0xf]
        %v679 = vld [vmem:[%s538 + $0xc] sm:$0xf]
        %v680 = vlaneseq
        %v681 = vshrl.u32 %v680, 7
        %v682 = vsub.s32 4, %v681
        %v683 = vrot.slane %v633, %v682
        %v688 = vunpack.c.l.b16 %v676
        %v689 = vunpack.c.l.b16 %v677
        %v690 = vunpack.c.l.b16 %v678
        %v691 = vunpack.c.l.b16 %v679
        %v692 = vpack.c.b16 %v689, %v688
        %v693 = vpack.c.b16 %v691, %v690
        %v697 = vsel %vm635, %v675, 0
        %699 = vmatprep.subr.bf16.mxu0 0
        %700 = vmatpush1.bf16.msra.mxu0 %v692
        %701 = vmatprep.subr.bf16.mxu0 0
        %702 = vmatpush1.bf16.msra.mxu0 %v693
        %703 = vmatprep.subr.bf16.mxu0 0
        %704 = vmatpush1.bf16.msra.mxu0 0
        %705 = vmatprep.subr.bf16.mxu0 0
        %706 = vmatpush1.bf16.msra.mxu0 0
        %707 = vmatprep.subr.bf16.mxu0 0
        %708 = vmatpush1.bf16.msra.mxu0 0
        %709 = vmatprep.subr.bf16.mxu0 0
        %710 = vmatpush1.bf16.msra.mxu0 0
        %711 = vmatprep.subr.bf16.mxu0 0
        %712 = vmatpush1.bf16.msra.mxu0 0
        %713 = vmatprep.subr.bf16.mxu0 0
        %714 = vmatpush1.bf16.msra.mxu0 0
        %715 = vmatprep.subr.bf16.mxu0 0
        %716 = vmatpush1.bf16.msra.mxu0 0
        %717 = vmatprep.subr.bf16.mxu0 0
        %718 = vmatpush1.bf16.msra.mxu0 0
        %719 = vmatprep.subr.bf16.mxu0 0
        %720 = vmatpush1.bf16.msra.mxu0 0
        %721 = vmatprep.subr.bf16.mxu0 0
        %722 = vmatpush1.bf16.msra.mxu0 0
        %723 = vmatprep.subr.bf16.mxu0 0
        %724 = vmatpush1.bf16.msra.mxu0 0
        %725 = vmatprep.subr.bf16.mxu0 0
        %726 = vmatpush1.bf16.msra.mxu0 0
        %727 = vmatprep.subr.bf16.mxu0 0
        %728 = vmatpush1.bf16.msra.mxu0 0
        %729 = vmatprep.subr.bf16.mxu0 0
        %730 = vmatpush1.bf16.msra.mxu0 0
        %731 = vmatprep.mubr.bf16.mxu0 0
        %732 = vmatmul.mubr.bf16.gmra.mrb[0].mxu0 %v697
        %v733 = vpop.f32.mrb[0].mxu0
        %v734 = vadd.f32 %v683, %v733
        %v735 = vpop.f32.mrb[0].mxu0
        %v736 = vpop.f32.mrb[0].mxu0
        %v737 = vadd.f32 %v683, %v736
        %v738 = vpop.f32.mrb[0].mxu0
        %739 = vdwg.mxu0
        %s740 = scalar_lea.vmem %s538, 16
        %v741 = vld [vmem:[%s740] sm:$0xf]
        %v742 = vld [vmem:[%s740 + $0x4] sm:$0xf]
        %v743 = vld [vmem:[%s740 + $0x8] sm:$0xf]
        %v744 = vld [vmem:[%s740 + $0xc] sm:$0xf]
        %v745 = vlaneseq
        %v746 = vshrl.u32 %v745, 7
        %v747 = vsub.s32 5, %v746
        %v748 = vrot.slane %v633, %v747
        %v753 = vunpack.c.l.b16 %v741
        %v754 = vunpack.c.l.b16 %v742
        %v755 = vunpack.c.l.b16 %v743
        %v756 = vunpack.c.l.b16 %v744
        %v757 = vpack.c.b16 %v754, %v753
        %v758 = vpack.c.b16 %v756, %v755
        %761 = vmatprep.subr.bf16.mxu0 0
        %762 = vmatpush1.bf16.msra.mxu0 %v757
        %763 = vmatprep.subr.bf16.mxu0 0
        %764 = vmatpush1.bf16.msra.mxu0 %v758
        %765 = vmatprep.subr.bf16.mxu0 0
        %766 = vmatpush1.bf16.msra.mxu0 0
        %767 = vmatprep.subr.bf16.mxu0 0
        %768 = vmatpush1.bf16.msra.mxu0 0
        %769 = vmatprep.subr.bf16.mxu0 0
        %770 = vmatpush1.bf16.msra.mxu0 0
        %771 = vmatprep.subr.bf16.mxu0 0
        %772 = vmatpush1.bf16.msra.mxu0 0
        %773 = vmatprep.subr.bf16.mxu0 0
        %774 = vmatpush1.bf16.msra.mxu0 0
        %775 = vmatprep.subr.bf16.mxu0 0
        %776 = vmatpush1.bf16.msra.mxu0 0
        %777 = vmatprep.subr.bf16.mxu0 0
        %778 = vmatpush1.bf16.msra.mxu0 0
        %779 = vmatprep.subr.bf16.mxu0 0
        %780 = vmatpush1.bf16.msra.mxu0 0
        %781 = vmatprep.subr.bf16.mxu0 0
        %782 = vmatpush1.bf16.msra.mxu0 0
        %783 = vmatprep.subr.bf16.mxu0 0
        %784 = vmatpush1.bf16.msra.mxu0 0
        %785 = vmatprep.subr.bf16.mxu0 0
        %786 = vmatpush1.bf16.msra.mxu0 0
        %787 = vmatprep.subr.bf16.mxu0 0
        %788 = vmatpush1.bf16.msra.mxu0 0
        %789 = vmatprep.subr.bf16.mxu0 0
        %790 = vmatpush1.bf16.msra.mxu0 0
        %791 = vmatprep.subr.bf16.mxu0 0
        %792 = vmatpush1.bf16.msra.mxu0 0
        %793 = vmatprep.mubr.bf16.mxu0 0
        %794 = vmatmul.mubr.bf16.gmra.mrb[0].mxu0 %v697
        %v795 = vpop.f32.mrb[0].mxu0
        %v796 = vadd.f32 %v748, %v795
        %v797 = vpop.f32.mrb[0].mxu0
        %v798 = vpop.f32.mrb[0].mxu0
        %v799 = vadd.f32 %v748, %v798
        %v800 = vpop.f32.mrb[0].mxu0
        %801 = vdwg.mxu0
        %s802 = scalar_lea.vmem %s538, 32
        %v803 = vld [vmem:[%s802] sm:$0xf]
        %v804 = vld [vmem:[%s802 + $0x4] sm:$0xf]
        %v805 = vld [vmem:[%s802 + $0x8] sm:$0xf]
        %v806 = vld [vmem:[%s802 + $0xc] sm:$0xf]
        %v807 = vlaneseq
        %v808 = vshrl.u32 %v807, 7
        %v809 = vsub.s32 6, %v808
        %v810 = vrot.slane %v633, %v809
        %v815 = vunpack.c.l.b16 %v803
        %v816 = vunpack.c.l.b16 %v804
        %v817 = vunpack.c.l.b16 %v805
        %v818 = vunpack.c.l.b16 %v806
        %v819 = vpack.c.b16 %v816, %v815
        %v820 = vpack.c.b16 %v818, %v817
        %823 = vmatprep.subr.bf16.mxu0 0
        %824 = vmatpush1.bf16.msra.mxu0 %v819
        %825 = vmatprep.subr.bf16.mxu0 0
        %826 = vmatpush1.bf16.msra.mxu0 %v820
        %827 = vmatprep.subr.bf16.mxu0 0
        %828 = vmatpush1.bf16.msra.mxu0 0
        %829 = vmatprep.subr.bf16.mxu0 0
        %830 = vmatpush1.bf16.msra.mxu0 0
        %831 = vmatprep.subr.bf16.mxu0 0
        %832 = vmatpush1.bf16.msra.mxu0 0
        %833 = vmatprep.subr.bf16.mxu0 0
        %834 = vmatpush1.bf16.msra.mxu0 0
        %835 = vmatprep.subr.bf16.mxu0 0
        %836 = vmatpush1.bf16.msra.mxu0 0
        %837 = vmatprep.subr.bf16.mxu0 0
        %838 = vmatpush1.bf16.msra.mxu0 0
        %839 = vmatprep.subr.bf16.mxu0 0
        %840 = vmatpush1.bf16.msra.mxu0 0
        %841 = vmatprep.subr.bf16.mxu0 0
        %842 = vmatpush1.bf16.msra.mxu0 0
        %843 = vmatprep.subr.bf16.mxu0 0
        %844 = vmatpush1.bf16.msra.mxu0 0
        %845 = vmatprep.subr.bf16.mxu0 0
        %846 = vmatpush1.bf16.msra.mxu0 0
        %847 = vmatprep.subr.bf16.mxu0 0
        %848 = vmatpush1.bf16.msra.mxu0 0
        %849 = vmatprep.subr.bf16.mxu0 0
        %850 = vmatpush1.bf16.msra.mxu0 0
        %851 = vmatprep.subr.bf16.mxu0 0
        %852 = vmatpush1.bf16.msra.mxu0 0
        %853 = vmatprep.subr.bf16.mxu0 0
        %854 = vmatpush1.bf16.msra.mxu0 0
        %855 = vmatprep.mubr.bf16.mxu0 0
        %856 = vmatmul.mubr.bf16.gmra.mrb[0].mxu0 %v697
        %v857 = vpop.f32.mrb[0].mxu0
        %v858 = vadd.f32 %v810, %v857
        %v859 = vpop.f32.mrb[0].mxu0
        %v860 = vpop.f32.mrb[0].mxu0
        %v861 = vadd.f32 %v810, %v860
        %v862 = vpop.f32.mrb[0].mxu0
        %863 = vdwg.mxu0
        %v864 = vpack.c.bf16 %v734, %v734
        %v865 = vpack.c.bf16 %v737, %v737
        %v866 = vpack.c.bf16 %v796, %v796
        %v867 = vpack.c.bf16 %v799, %v799
        %v868 = vpack.c.bf16 %v858, %v858
        %v869 = vpack.c.bf16 %v861, %v861
        %v870 = vld [vmem:[#allocation3] sm:$0xff]
        %v872 = vsel %vm635, %v864, 0
        %v875 = vsel %vm635, %v866, 0
        %877 = vmatprep.subr.bf16.mxu0 0
        %878 = vmatpush1.bf16.xpose.msra.mxu0 %v875
        %879 = vmatprep.subr.bf16.mxu0 0
        %880 = vmatpush1.bf16.xpose.msra.mxu0 0
        %881 = vmatprep.subr.bf16.mxu0 0
        %882 = vmatpush1.bf16.xpose.msra.mxu0 0
        %883 = vmatprep.subr.bf16.mxu0 0
        %884 = vmatpush1.bf16.xpose.msra.mxu0 0
        %885 = vmatprep.subr.bf16.mxu0 0
        %886 = vmatpush1.bf16.xpose.msra.mxu0 0
        %887 = vmatprep.subr.bf16.mxu0 0
        %888 = vmatpush1.bf16.xpose.msra.mxu0 0
        %889 = vmatprep.subr.bf16.mxu0 0
        %890 = vmatpush1.bf16.xpose.msra.mxu0 0
        %891 = vmatprep.subr.bf16.mxu0 0
        %892 = vmatpush1.bf16.xpose.msra.mxu0 0
        %893 = vmatprep.subr.bf16.mxu0 0
        %894 = vmatpush1.bf16.xpose.msra.mxu0 0
        %895 = vmatprep.subr.bf16.mxu0 0
        %896 = vmatpush1.bf16.xpose.msra.mxu0 0
        %897 = vmatprep.subr.bf16.mxu0 0
        %898 = vmatpush1.bf16.xpose.msra.mxu0 0
        %899 = vmatprep.subr.bf16.mxu0 0
        %900 = vmatpush1.bf16.xpose.msra.mxu0 0
        %901 = vmatprep.subr.bf16.mxu0 0
        %902 = vmatpush1.bf16.xpose.msra.mxu0 0
        %903 = vmatprep.subr.bf16.mxu0 0
        %904 = vmatpush1.bf16.xpose.msra.mxu0 0
        %905 = vmatprep.subr.bf16.mxu0 0
        %906 = vmatpush1.bf16.xpose.msra.mxu0 0
        %907 = vmatprep.subr.bf16.mxu0 0
        %908 = vmatpush1.bf16.xpose.msra.mxu0 0
        %909 = vmatprep.mubr.bf16.mxu0 0
        %910 = vmatmul.mubr.bf16.gmra.mrb[0].mxu0 %v872
        %v911 = vpop.f32.mrb[0].mxu0
        %v912 = vadd.f32 %v870, %v911
        %v913 = vpop.f32.mrb[0].mxu0
        %v914 = vpop.f32.mrb[0].mxu0
        %v915 = vpop.f32.mrb[0].mxu0
        %916 = vdwg.mxu0
        %v918 = vsel %vm635, %v865, 0
        %v921 = vsel %vm635, %v867, 0
        %923 = vmatprep.subr.bf16.mxu0 0
        %924 = vmatpush1.bf16.xpose.msra.mxu0 %v921
        %925 = vmatprep.subr.bf16.mxu0 0
        %926 = vmatpush1.bf16.xpose.msra.mxu0 0
        %927 = vmatprep.subr.bf16.mxu0 0
        %928 = vmatpush1.bf16.xpose.msra.mxu0 0
        %929 = vmatprep.subr.bf16.mxu0 0
        %930 = vmatpush1.bf16.xpose.msra.mxu0 0
        %931 = vmatprep.subr.bf16.mxu0 0
        %932 = vmatpush1.bf16.xpose.msra.mxu0 0
        %933 = vmatprep.subr.bf16.mxu0 0
        %934 = vmatpush1.bf16.xpose.msra.mxu0 0
        %935 = vmatprep.subr.bf16.mxu0 0
        %936 = vmatpush1.bf16.xpose.msra.mxu0 0
        %937 = vmatprep.subr.bf16.mxu0 0
        %938 = vmatpush1.bf16.xpose.msra.mxu0 0
        %939 = vmatprep.subr.bf16.mxu0 0
        %940 = vmatpush1.bf16.xpose.msra.mxu0 0
        %941 = vmatprep.subr.bf16.mxu0 0
        %942 = vmatpush1.bf16.xpose.msra.mxu0 0
        %943 = vmatprep.subr.bf16.mxu0 0
        %944 = vmatpush1.bf16.xpose.msra.mxu0 0
        %945 = vmatprep.subr.bf16.mxu0 0
        %946 = vmatpush1.bf16.xpose.msra.mxu0 0
        %947 = vmatprep.subr.bf16.mxu0 0
        %948 = vmatpush1.bf16.xpose.msra.mxu0 0
        %949 = vmatprep.subr.bf16.mxu0 0
        %950 = vmatpush1.bf16.xpose.msra.mxu0 0
        %951 = vmatprep.subr.bf16.mxu0 0
        %952 = vmatpush1.bf16.xpose.msra.mxu0 0
        %953 = vmatprep.subr.bf16.mxu0 0
        %954 = vmatpush1.bf16.xpose.msra.mxu0 0
        %955 = vmatprep.mubr.bf16.mxu0 0
        %956 = vmatmul.mubr.bf16.gmra.mrb[0].mxu0 %v918
        %v957 = vpop.f32.mrb[0].mxu0
        %v958 = vadd.f32 %v870, %v957
        %v959 = vpop.f32.mrb[0].mxu0
        %v960 = vpop.f32.mrb[0].mxu0
        %v961 = vpop.f32.mrb[0].mxu0
        %962 = vdwg.mxu0
        %vm963 = vcmask 64512
        %v964 = vsel %vm963, %v912, -inf
        %965 = vmax.xlane.f32.xlu0 %v964
        %v966 = vpop.xlane.xlu0 %965
        %v967 = vsel %vm963, %v958, -inf
        %968 = vmax.xlane.f32.xlu0 %v967
        %v969 = vpop.xlane.xlu0 %968
        %v970 = vsub.f32 %v912, %v966
        %v971 = vsub.f32 %v958, %v969
        %v972 = vmul.f32 %v970, 1.442695
        %v973 = vpow.pop %v972
        %v974 = vmul.f32 %v971, 1.442695
        %v975 = vpow.pop %v974
        %v976 = vsel %vm963, %v973, 0.0
        %977 = vadd.xlane.f32.xlu0 %v976
        %v978 = vpop.xlane.xlu0 %977
        %v979 = vsel %vm963, %v975, 0.0
        %980 = vadd.xlane.f32.xlu0 %v979
        %v981 = vpop.xlane.xlu0 %980
        %v982 = vrcp.pop %v978
        %v983 = vrcp.pop %v981
        %v984 = vmul.f32 %v973, %v982
        %v985 = vmul.f32 %v975, %v983
        %v986 = vpack.c.bf16 %v984, %v984
        %v987 = vpack.c.bf16 %v985, %v985
        %v989 = vsel %vm963, %v986, 0
        %vm991 = vcmask 1043456
        %v993 = vsel %vm991, %v868, 0
        %995 = vmatprep.subr.bf16.mxu0 0
        %996 = vmatpush1.bf16.msra.mxu0 %v993
        %997 = vmatprep.subr.bf16.mxu0 0
        %998 = vmatpush1.bf16.msra.mxu0 0
        %999 = vmatprep.subr.bf16.mxu0 0
        %1000 = vmatpush1.bf16.msra.mxu0 0
        %1001 = vmatprep.subr.bf16.mxu0 0
        %1002 = vmatpush1.bf16.msra.mxu0 0
        %1003 = vmatprep.subr.bf16.mxu0 0
        %1004 = vmatpush1.bf16.msra.mxu0 0
        %1005 = vmatprep.subr.bf16.mxu0 0
        %1006 = vmatpush1.bf16.msra.mxu0 0
        %1007 = vmatprep.subr.bf16.mxu0 0
        %1008 = vmatpush1.bf16.msra.mxu0 0
        %1009 = vmatprep.subr.bf16.mxu0 0
        %1010 = vmatpush1.bf16.msra.mxu0 0
        %1011 = vmatprep.subr.bf16.mxu0 0
        %1012 = vmatpush1.bf16.msra.mxu0 0
        %1013 = vmatprep.subr.bf16.mxu0 0
        %1014 = vmatpush1.bf16.msra.mxu0 0
        %1015 = vmatprep.subr.bf16.mxu0 0
        %1016 = vmatpush1.bf16.msra.mxu0 0
        %1017 = vmatprep.subr.bf16.mxu0 0
        %1018 = vmatpush1.bf16.msra.mxu0 0
        %1019 = vmatprep.subr.bf16.mxu0 0
        %1020 = vmatpush1.bf16.msra.mxu0 0
        %1021 = vmatprep.subr.bf16.mxu0 0
        %1022 = vmatpush1.bf16.msra.mxu0 0
        %1023 = vmatprep.subr.bf16.mxu0 0
        %1024 = vmatpush1.bf16.msra.mxu0 0
        %1025 = vmatprep.subr.bf16.mxu0 0
        %1026 = vmatpush1.bf16.msra.mxu0 0
        %1027 = vmatprep.mubr.bf16.mxu0 0
        %1028 = vmatmul.mubr.bf16.gmra.mrb[0].mxu0 %v989
        %v1029 = vpop.f32.mrb[0].mxu0
        %v1030 = vadd.f32 0.0, %v1029
        %v1031 = vpop.f32.mrb[0].mxu0
        %v1032 = vpop.f32.mrb[0].mxu0
        %v1033 = vpop.f32.mrb[0].mxu0
        %1034 = vdwg.mxu0
        %v1036 = vsel %vm963, %v987, 0
        %v1039 = vsel %vm991, %v869, 0
        %1041 = vmatprep.subr.bf16.mxu0 0
        %1042 = vmatpush1.bf16.msra.mxu0 %v1039
        %1043 = vmatprep.subr.bf16.mxu0 0
        %1044 = vmatpush1.bf16.msra.mxu0 0
        %1045 = vmatprep.subr.bf16.mxu0 0
        %1046 = vmatpush1.bf16.msra.mxu0 0
        %1047 = vmatprep.subr.bf16.mxu0 0
        %1048 = vmatpush1.bf16.msra.mxu0 0
        %1049 = vmatprep.subr.bf16.mxu0 0
        %1050 = vmatpush1.bf16.msra.mxu0 0
        %1051 = vmatprep.subr.bf16.mxu0 0
        %1052 = vmatpush1.bf16.msra.mxu0 0
        %1053 = vmatprep.subr.bf16.mxu0 0
        %1054 = vmatpush1.bf16.msra.mxu0 0
        %1055 = vmatprep.subr.bf16.mxu0 0
        %1056 = vmatpush1.bf16.msra.mxu0 0
        %1057 = vmatprep.subr.bf16.mxu0 0
        %1058 = vmatpush1.bf16.msra.mxu0 0
        %1059 = vmatprep.subr.bf16.mxu0 0
        %1060 = vmatpush1.bf16.msra.mxu0 0
        %1061 = vmatprep.subr.bf16.mxu0 0
        %1062 = vmatpush1.bf16.msra.mxu0 0
        %1063 = vmatprep.subr.bf16.mxu0 0
        %1064 = vmatpush1.bf16.msra.mxu0 0
        %1065 = vmatprep.subr.bf16.mxu0 0
        %1066 = vmatpush1.bf16.msra.mxu0 0
        %1067 = vmatprep.subr.bf16.mxu0 0
        %1068 = vmatpush1.bf16.msra.mxu0 0
        %1069 = vmatprep.subr.bf16.mxu0 0
        %1070 = vmatpush1.bf16.msra.mxu0 0
        %1071 = vmatprep.subr.bf16.mxu0 0
        %1072 = vmatpush1.bf16.msra.mxu0 0
        %1073 = vmatprep.mubr.bf16.mxu0 0
        %1074 = vmatmul.mubr.bf16.gmra.mrb[0].mxu0 %v1036
        %v1075 = vpop.f32.mrb[0].mxu0
        %v1076 = vadd.f32 0.0, %v1075
        %v1077 = vpop.f32.mrb[0].mxu0
        %v1078 = vpop.f32.mrb[0].mxu0
        %v1079 = vpop.f32.mrb[0].mxu0
        %1080 = vdwg.mxu0
        %v1081 = vpack.c.bf16 %v1076, %v1030
        %v1082 = vld [vmem:[%s543] sm:$0xf]
        %v1083 = vld [vmem:[%s543 + $0x4] sm:$0xf]
        %v1084 = vld [vmem:[%s543 + $0x8] sm:$0xf]
        %v1085 = vld [vmem:[%s543 + $0xc] sm:$0xf]
        %v1086 = vlaneseq
        %v1087 = vshrl.u32 %v1086, 7
        %v1088 = vsub.s32 7, %v1087
        %v1089 = vrot.slane %v633, %v1088
        %v1094 = vunpack.c.l.b16 %v1082
        %v1095 = vunpack.c.l.b16 %v1083
        %v1096 = vunpack.c.l.b16 %v1084
        %v1097 = vunpack.c.l.b16 %v1085
        %v1098 = vpack.c.b16 %v1095, %v1094
        %v1099 = vpack.c.b16 %v1097, %v1096
        %v1103 = vsel %vm635, %v1081, 0
        %1105 = vmatprep.subr.bf16.mxu0 0
        %1106 = vmatpush1.bf16.msra.mxu0 %v1098
        %1107 = vmatprep.subr.bf16.mxu0 0
        %1108 = vmatpush1.bf16.msra.mxu0 %v1099
        %1109 = vmatprep.subr.bf16.mxu0 0
        %1110 = vmatpush1.bf16.msra.mxu0 0
        %1111 = vmatprep.subr.bf16.mxu0 0
        %1112 = vmatpush1.bf16.msra.mxu0 0
        %1113 = vmatprep.subr.bf16.mxu0 0
        %1114 = vmatpush1.bf16.msra.mxu0 0
        %1115 = vmatprep.subr.bf16.mxu0 0
        %1116 = vmatpush1.bf16.msra.mxu0 0
        %1117 = vmatprep.subr.bf16.mxu0 0
        %1118 = vmatpush1.bf16.msra.mxu0 0
        %1119 = vmatprep.subr.bf16.mxu0 0
        %1120 = vmatpush1.bf16.msra.mxu0 0
        %1121 = vmatprep.subr.bf16.mxu0 0
        %1122 = vmatpush1.bf16.msra.mxu0 0
        %1123 = vmatprep.subr.bf16.mxu0 0
        %1124 = vmatpush1.bf16.msra.mxu0 0
        %1125 = vmatprep.subr.bf16.mxu0 0
        %1126 = vmatpush1.bf16.msra.mxu0 0
        %1127 = vmatprep.subr.bf16.mxu0 0
        %1128 = vmatpush1.bf16.msra.mxu0 0
        %1129 = vmatprep.subr.bf16.mxu0 0
        %1130 = vmatpush1.bf16.msra.mxu0 0
        %1131 = vmatprep.subr.bf16.mxu0 0
        %1132 = vmatpush1.bf16.msra.mxu0 0
        %1133 = vmatprep.subr.bf16.mxu0 0
        %1134 = vmatpush1.bf16.msra.mxu0 0
        %1135 = vmatprep.subr.bf16.mxu0 0
        %1136 = vmatpush1.bf16.msra.mxu0 0
        %1137 = vmatprep.mubr.bf16.mxu0 0
        %1138 = vmatmul.mubr.bf16.gmra.mrb[0].mxu0 %v1103
        %v1139 = vpop.f32.mrb[0].mxu0
        %v1140 = vadd.f32 %v1089, %v1139
        %v1141 = vpop.f32.mrb[0].mxu0
        %v1142 = vpop.f32.mrb[0].mxu0
        %v1143 = vadd.f32 %v1089, %v1142
        %v1144 = vpop.f32.mrb[0].mxu0
        %1145 = vdwg.mxu0
        %v1146 = vadd.f32 %v631, %v1140
        %v1147 = vadd.f32 %v632, %v1143
        %v1148 = vsel %vm635, %v1146, 0.0
        %1149 = vadd.xlane.f32.xlu0 %v1148
        %v1150 = vpop.xlane.xlu0 %1149
        %v1151 = vsel %vm635, %v1147, 0.0
        %1152 = vadd.xlane.f32.xlu0 %v1151
        %v1153 = vpop.xlane.xlu0 %1152
        %v1154 = vmul.f32 %v1150, %v642
        %v1155 = vmul.f32 %v1153, %v642
        %v1156 = vsub.f32 %v1146, %v1154
        %v1157 = vsub.f32 %v1147, %v1155
        %v1158 = vmul.f32 %v1156, %v1156
        %v1159 = vmul.f32 %v1157, %v1157
        %v1160 = vsel %vm635, %v1158, 0.0
        %1161 = vadd.xlane.f32.xlu0 %v1160
        %v1162 = vpop.xlane.xlu0 %1161
        %v1163 = vsel %vm635, %v1159, 0.0
        %1164 = vadd.xlane.f32.xlu0 %v1163
        %v1165 = vpop.xlane.xlu0 %1164
        %v1166 = vmul.f32 %v1162, %v642
        %v1167 = vmul.f32 %v1165, %v642
        %v1168 = vadd.f32 %v1166, 1e-05
        %v1169 = vadd.f32 %v1167, 1e-05
        %v1170 = vrsqrt.pop %v1168
        %v1171 = vrsqrt.pop %v1169
        %v1172 = vmul.f32 %v1156, %v1170
        %v1173 = vmul.f32 %v1157, %v1171
        %v1174 = vlaneseq
        %v1175 = vshrl.u32 %v1174, 7
        %v1176 = vsub.s32 2, %v1175
        %v1177 = vrot.slane %v633, %v1176
        %v1178 = vmul.f32 %v1172, %v1177
        %v1179 = vmul.f32 %v1173, %v1177
        %v1180 = vlaneseq
        %v1181 = vshrl.u32 %v1180, 7
        %v1182 = vsub.s32 3, %v1181
        %v1183 = vrot.slane %v633, %v1182
        %v1184 = vadd.f32 %v1178, %v1183
        %v1185 = vadd.f32 %v1179, %v1183
        %v1186 = vpack.c.bf16 %v1185, %v1184
        %v1187 = vld [vmem:[%s548] sm:$0xf]
        %v1188 = vld [vmem:[%s548 + $0x4] sm:$0xf]
        %v1189 = vld [vmem:[%s548 + $0x8] sm:$0xf]
        %v1190 = vld [vmem:[%s548 + $0xc] sm:$0xf]
        %v1191 = vlaneseq
        %v1192 = vshrl.u32 %v1191, 7
        %v1193 = vsub.s32 1, %v1192
        %v1194 = vrot.slane %v634, %v1193
        %v1199 = vunpack.c.l.b16 %v1187
        %v1200 = vunpack.c.l.b16 %v1188
        %v1201 = vunpack.c.l.b16 %v1189
        %v1202 = vunpack.c.l.b16 %v1190
        %v1203 = vpack.c.b16 %v1200, %v1199
        %v1204 = vpack.c.b16 %v1202, %v1201
        %v1208 = vsel %vm635, %v1186, 0
        %1210 = vmatprep.subr.bf16.mxu0 0
        %1211 = vmatpush1.bf16.msra.mxu0 %v1203
        %1212 = vmatprep.subr.bf16.mxu0 0
        %1213 = vmatpush1.bf16.msra.mxu0 %v1204
        %1214 = vmatprep.subr.bf16.mxu0 0
        %1215 = vmatpush1.bf16.msra.mxu0 0
        %1216 = vmatprep.subr.bf16.mxu0 0
        %1217 = vmatpush1.bf16.msra.mxu0 0
        %1218 = vmatprep.subr.bf16.mxu0 0
        %1219 = vmatpush1.bf16.msra.mxu0 0
        %1220 = vmatprep.subr.bf16.mxu0 0
        %1221 = vmatpush1.bf16.msra.mxu0 0
        %1222 = vmatprep.subr.bf16.mxu0 0
        %1223 = vmatpush1.bf16.msra.mxu0 0
        %1224 = vmatprep.subr.bf16.mxu0 0
        %1225 = vmatpush1.bf16.msra.mxu0 0
        %1226 = vmatprep.subr.bf16.mxu0 0
        %1227 = vmatpush1.bf16.msra.mxu0 0
        %1228 = vmatprep.subr.bf16.mxu0 0
        %1229 = vmatpush1.bf16.msra.mxu0 0
        %1230 = vmatprep.subr.bf16.mxu0 0
        %1231 = vmatpush1.bf16.msra.mxu0 0
        %1232 = vmatprep.subr.bf16.mxu0 0
        %1233 = vmatpush1.bf16.msra.mxu0 0
        %1234 = vmatprep.subr.bf16.mxu0 0
        %1235 = vmatpush1.bf16.msra.mxu0 0
        %1236 = vmatprep.subr.bf16.mxu0 0
        %1237 = vmatpush1.bf16.msra.mxu0 0
        %1238 = vmatprep.subr.bf16.mxu0 0
        %1239 = vmatpush1.bf16.msra.mxu0 0
        %1240 = vmatprep.subr.bf16.mxu0 0
        %1241 = vmatpush1.bf16.msra.mxu0 0
        %1242 = vmatprep.mubr.bf16.mxu0 0
        %1243 = vmatmul.mubr.bf16.gmra.mrb[0].mxu0 %v1208
        %v1244 = vpop.f32.mrb[0].mxu0
        %v1245 = vadd.f32 %v1194, %v1244
        %v1246 = vpop.f32.mrb[0].mxu0
        %v1247 = vpop.f32.mrb[0].mxu0
        %v1248 = vadd.f32 %v1194, %v1247
        %v1249 = vpop.f32.mrb[0].mxu0
        %1250 = vdwg.mxu0
        %v1251 = vmul.f32 %v1245, %v1245
        %v1252 = vmul.f32 %v1248, %v1248
        %v1253 = vmul.f32 %v1245, %v1251
        %v1254 = vmul.f32 %v1248, %v1252
        %v1255 = vmul.f32 %v1253, 0.044715
        %v1256 = vmul.f32 %v1254, 0.044715
        %v1257 = vadd.f32 %v1245, %v1255
        %v1258 = vadd.f32 %v1248, %v1256
        %v1259 = vmul.f32 %v1257, 0.7978846
        %v1260 = vmul.f32 %v1258, 0.7978846
        %v1261 = vtanh.pop %v1259
        %v1262 = vtanh.pop %v1260
        %v1263 = vadd.f32 %v1261, 1.0
        %v1264 = vadd.f32 %v1262, 1.0
        %v1265 = vmul.f32 %v1263, 0.5
        %v1266 = vmul.f32 %v1264, 0.5
        %v1267 = vmul.f32 %v1245, %v1265
        %v1268 = vmul.f32 %v1248, %v1266
        %v1269 = vpack.c.bf16 %v1268, %v1267
        %v1270 = vld [vmem:[%s553] sm:$0xf]
        %v1271 = vld [vmem:[%s553 + $0x4] sm:$0xf]
        %v1272 = vld [vmem:[%s553 + $0x8] sm:$0xf]
        %v1273 = vld [vmem:[%s553 + $0xc] sm:$0xf]
        %v1274 = vld [vmem:[%s553 + $0x10] sm:$0xf]
        %v1275 = vld [vmem:[%s553 + $0x14] sm:$0xf]
        %v1276 = vld [vmem:[%s553 + $0x18] sm:$0xf]
        %v1277 = vld [vmem:[%s553 + $0x1c] sm:$0xf]
        %v1278 = vld [vmem:[%s553 + $0x20] sm:$0xf]
        %v1279 = vld [vmem:[%s553 + $0x24] sm:$0xf]
        %v1280 = vld [vmem:[%s553 + $0x28] sm:$0xf]
        %v1281 = vld [vmem:[%s553 + $0x2c] sm:$0xf]
        %v1282 = vld [vmem:[%s553 + $0x30] sm:$0xf]
        %v1283 = vld [vmem:[%s553 + $0x34] sm:$0xf]
        %v1284 = vld [vmem:[%s553 + $0x38] sm:$0xf]
        %v1285 = vld [vmem:[%s553 + $0x3c] sm:$0xf]
        %v1286 = vlaneseq
        %v1287 = vshrl.u32 %v1286, 7
        %v1288 = vsub.s32 0, %v1287
        %v1289 = vrot.slane %v634, %v1288
        %v1306 = vunpack.c.l.b16 %v1270
        %v1307 = vunpack.c.l.b16 %v1271
        %v1308 = vunpack.c.l.b16 %v1272
        %v1309 = vunpack.c.l.b16 %v1273
        %v1310 = vunpack.c.l.b16 %v1274
        %v1311 = vunpack.c.l.b16 %v1275
        %v1312 = vunpack.c.l.b16 %v1276
        %v1313 = vunpack.c.l.b16 %v1277
        %v1314 = vunpack.c.l.b16 %v1278
        %v1315 = vunpack.c.l.b16 %v1279
        %v1316 = vunpack.c.l.b16 %v1280
        %v1317 = vunpack.c.l.b16 %v1281
        %v1318 = vunpack.c.l.b16 %v1282
        %v1319 = vunpack.c.l.b16 %v1283
        %v1320 = vunpack.c.l.b16 %v1284
        %v1321 = vunpack.c.l.b16 %v1285
        %v1322 = vpack.c.b16 %v1307, %v1306
        %v1323 = vpack.c.b16 %v1309, %v1308
        %v1324 = vpack.c.b16 %v1311, %v1310
        %v1325 = vpack.c.b16 %v1313, %v1312
        %v1326 = vpack.c.b16 %v1315, %v1314
        %v1327 = vpack.c.b16 %v1317, %v1316
        %v1328 = vpack.c.b16 %v1319, %v1318
        %v1329 = vpack.c.b16 %v1321, %v1320
        %1338 = vmatprep.subr.bf16.mxu0 0
        %1339 = vmatpush1.bf16.msra.mxu0 %v1322
        %1340 = vmatprep.subr.bf16.mxu0 0
        %1341 = vmatpush1.bf16.msra.mxu0 %v1323
        %1342 = vmatprep.subr.bf16.mxu0 0
        %1343 = vmatpush1.bf16.msra.mxu0 %v1324
        %1344 = vmatprep.subr.bf16.mxu0 0
        %1345 = vmatpush1.bf16.msra.mxu0 %v1325
        %1346 = vmatprep.subr.bf16.mxu0 0
        %1347 = vmatpush1.bf16.msra.mxu0 %v1326
        %1348 = vmatprep.subr.bf16.mxu0 0
        %1349 = vmatpush1.bf16.msra.mxu0 %v1327
        %1350 = vmatprep.subr.bf16.mxu0 0
        %1351 = vmatpush1.bf16.msra.mxu0 %v1328
        %1352 = vmatprep.subr.bf16.mxu0 0
        %1353 = vmatpush1.bf16.msra.mxu0 %v1329
        %1354 = vmatprep.subr.bf16.mxu0 0
        %1355 = vmatpush1.bf16.msra.mxu0 0
        %1356 = vmatprep.subr.bf16.mxu0 0
        %1357 = vmatpush1.bf16.msra.mxu0 0
        %1358 = vmatprep.subr.bf16.mxu0 0
        %1359 = vmatpush1.bf16.msra.mxu0 0
        %1360 = vmatprep.subr.bf16.mxu0 0
        %1361 = vmatpush1.bf16.msra.mxu0 0
        %1362 = vmatprep.subr.bf16.mxu0 0
        %1363 = vmatpush1.bf16.msra.mxu0 0
        %1364 = vmatprep.subr.bf16.mxu0 0
        %1365 = vmatpush1.bf16.msra.mxu0 0
        %1366 = vmatprep.subr.bf16.mxu0 0
        %1367 = vmatpush1.bf16.msra.mxu0 0
        %1368 = vmatprep.subr.bf16.mxu0 0
        %1369 = vmatpush1.bf16.msra.mxu0 0
        %1370 = vmatprep.mubr.bf16.mxu0 0
        %1371 = vmatmul.mubr.bf16.gmra.mrb[0].mxu0 %v1269
        %v1372 = vpop.f32.mrb[0].mxu0
        %v1373 = vadd.f32 %v1289, %v1372
        %v1374 = vpop.f32.mrb[0].mxu0
        %v1375 = vpop.f32.mrb[0].mxu0
        %v1376 = vadd.f32 %v1289, %v1375
        %v1377 = vpop.f32.mrb[0].mxu0
        %1378 = vdwg.mxu0
        %v1379 = vadd.f32 %v1146, %v1373
        %v1380 = vadd.f32 %v1147, %v1376
        %1381 = vst.msk [vmem:[#allocation2] sm:$0xff] %vm635, %v1379
        %1382 = vst.msk [vmem:[#allocation2 + $0x8] sm:$0xff] %vm635, %v1380
        %p1383 = scmp.eq.s32.totalorder %s31, 1
        // Predicated region
        $region81: #{tpu_custom_call.1} parent=71 // pred_check
          %p1384 = pneg %p1383
        $region82: #{tpu_custom_call.1} parent=71 // pred_check_branch
          %1386 = sbr.rel (%p1384) target = $region84
        $region83: #{tpu_custom_call.1} parent=71 // pred_region
          %v1387 = vld [vmem:[%s10] sm:$0x1]
          %v1388 = vld [vmem:[%s10 + $0x1] sm:$0x1]
          %v1391 = vrot.slane %v1380, 7
          %vm1392 = vcmask 1047559
          %v1393 = vsel %vm1392, %v1391, %v1379
          %vm1395 = vcmask 261126
          %v1396 = vsel %vm1395, %v1393, 0.0
          %1397 = vadd.xlane.f32.xlu0 %v1396
          %v1398 = vpop.xlane.xlu0 %1397
          %v1399 = vmul.f32 %v1398, %v642
          %v1401 = vrot.slane %v1399, 1
          %v1404 = vsub.f32 %v1379, %v1399
          %v1405 = vsub.f32 %v1380, %v1401
          %v1406 = vmul.f32 %v1404, %v1404
          %v1407 = vmul.f32 %v1405, %v1405
          %v1410 = vrot.slane %v1407, 7
          %v1411 = vsel %vm1392, %v1410, %v1406
          %v1413 = vsel %vm1395, %v1411, 0.0
          %1414 = vadd.xlane.f32.xlu0 %v1413
          %v1415 = vpop.xlane.xlu0 %1414
          %v1416 = vmul.f32 %v1415, %v642
          %v1417 = vadd.f32 %v1416, 1e-05
          %v1418 = vrsqrt.pop %v1417
          %v1420 = vrot.slane %v1418, 1
          %v1423 = vmul.f32 %v1404, %v1418
          %v1424 = vmul.f32 %v1405, %v1420
          %v1425 = vlaneseq
          %v1426 = vshrl.u32 %v1425, 7
          %v1427 = vsub.s32 0, %v1426
          %v1428 = vrot.slane %v1387, %v1427
          %v1429 = vmul.f32 %v1423, %v1428
          %v1430 = vmul.f32 %v1424, %v1428
          %v1431 = vlaneseq
          %v1432 = vshrl.u32 %v1431, 7
          %v1433 = vsub.s32 0, %v1432
          %v1434 = vrot.slane %v1388, %v1433
          %v1435 = vadd.f32 %v1429, %v1434
          %v1436 = vadd.f32 %v1430, %v1434
          %v1437 = vpack.c.bf16 %v1435, %v1435
          %v1438 = vpack.c.bf16 %v1436, %v1436
          %v1439 = vld [vmem:[%s11] sm:$0xf]
          %v1440 = vld [vmem:[%s11 + $0x4] sm:$0xf]
          %v1441 = vld [vmem:[%s11 + $0x8] sm:$0xf]
          %v1442 = vld [vmem:[%s11 + $0xc] sm:$0xf]
          %v1443 = vld [vmem:[%s12] sm:$0x1]
          %v1445 = vlaneseq
          %v1446 = vshrl.u32 %v1445, 7
          %v1447 = vsub.s32 0, %v1446
          %v1448 = vrot.slane %v1443, %v1447
          %v1452 = vunpack.c.l.b16 %v1437
          %v1453 = vunpack.c.l.b16 %v1438
          %v1454 = vrot.slane %v1452, 6
          %v1455 = vrot.slane %v1453, 5
          %vm1456 = vcmask 1041409
          %v1457 = vsel %vm1456, %v1455, %v1454
          %v1458 = vpack.c.b16 %v1457, %v1457
          %v1463 = vunpack.c.l.b16 %v1439
          %v1464 = vunpack.c.l.b16 %v1440
          %v1465 = vunpack.c.l.b16 %v1441
          %v1466 = vunpack.c.l.b16 %v1442
          %v1467 = vpack.c.b16 %v1464, %v1463
          %v1468 = vpack.c.b16 %v1466, %v1465
          %v1472 = vsel %vm635, %v1458, 0
          %1474 = vmatprep.subr.bf16.mxu0 0
          %1475 = vmatpush1.bf16.msra.mxu0 %v1467
          %1476 = vmatprep.subr.bf16.mxu0 0
          %1477 = vmatpush1.bf16.msra.mxu0 %v1468
          %1478 = vmatprep.subr.bf16.mxu0 0
          %1479 = vmatpush1.bf16.msra.mxu0 0
          %1480 = vmatprep.subr.bf16.mxu0 0
          %1481 = vmatpush1.bf16.msra.mxu0 0
          %1482 = vmatprep.subr.bf16.mxu0 0
          %1483 = vmatpush1.bf16.msra.mxu0 0
          %1484 = vmatprep.subr.bf16.mxu0 0
          %1485 = vmatpush1.bf16.msra.mxu0 0
          %1486 = vmatprep.subr.bf16.mxu0 0
          %1487 = vmatpush1.bf16.msra.mxu0 0
          %1488 = vmatprep.subr.bf16.mxu0 0
          %1489 = vmatpush1.bf16.msra.mxu0 0
          %1490 = vmatprep.subr.bf16.mxu0 0
          %1491 = vmatpush1.bf16.msra.mxu0 0
          %1492 = vmatprep.subr.bf16.mxu0 0
          %1493 = vmatpush1.bf16.msra.mxu0 0
          %1494 = vmatprep.subr.bf16.mxu0 0
          %1495 = vmatpush1.bf16.msra.mxu0 0
          %1496 = vmatprep.subr.bf16.mxu0 0
          %1497 = vmatpush1.bf16.msra.mxu0 0
          %1498 = vmatprep.subr.bf16.mxu0 0
          %1499 = vmatpush1.bf16.msra.mxu0 0
          %1500 = vmatprep.subr.bf16.mxu0 0
          %1501 = vmatpush1.bf16.msra.mxu0 0
          %1502 = vmatprep.subr.bf16.mxu0 0
          %1503 = vmatpush1.bf16.msra.mxu0 0
          %1504 = vmatprep.subr.bf16.mxu0 0
          %1505 = vmatpush1.bf16.msra.mxu0 0
          %1506 = vmatprep.mubr.bf16.mxu0 0
          %1507 = vmatmul.mubr.bf16.gmra.mrb[0].mxu0 %v1472
          %v1508 = vpop.f32.mrb[0].mxu0
          %v1509 = vadd.f32 %v1448, %v1508
          %v1510 = vpop.f32.mrb[0].mxu0
          %v1511 = vpop.f32.mrb[0].mxu0
          %v1512 = vpop.f32.mrb[0].mxu0
          %1513 = vdwg.mxu0
          %1514 = vst [vmem:[#allocation6] sm:$0x3] %v1509
        $region84: #{tpu_custom_call.1} parent=71 // pred_fallthru
          _
        // Predicated region
        $region85: #{tpu_custom_call.1} parent=71 // pred_check
          %p1515 = pneg %p359
        $region86: #{tpu_custom_call.1} parent=71 // pred_check_branch
          %1517 = sbr.rel (%p1515) target = $region88
        $region87: #{tpu_custom_call.1} parent=71 // pred_region
          %s1519 = ssub.s32 32, 32
          %1520 = vsyncadd [#allocation5], %s1519
          %s1521 = smul.addr %s30, 32
          %s1522 = scalar_lea.hbm %s13, %s1521
          %s1524 = sshll.u32 [#allocation6], 4
          %s1525 = int_to_ptr.vmem [resolvable:$true] %s1524
          %1527 = dma.vmem_to_hbm [thread:$0]  %s1525, 32, %s1522, [#allocation5]
        $region88: #{tpu_custom_call.1} parent=71 // pred_fallthru
          _
        // Predicated region
        $region89: #{tpu_custom_call.1} parent=71 // pred_check
          %p1528 = pneg %p359
        $region90: #{tpu_custom_call.1} parent=71 // pred_check_branch
          %1530 = sbr.rel (%p1528) target = $region92
        $region91: #{tpu_custom_call.1} parent=71 // pred_region
          %1531 = dma.done [#allocation5], 32
        $region92: #{tpu_custom_call.1} parent=71 // pred_fallthru
          _
      $region72: #{tpu_custom_call.1} parent=5 // pred_fallthru
        _
      %p1532 = scmp.le.s32.totalorder 2, %s21
      // Predicated region
      $region93: #{tpu_custom_call.1} parent=5 // pred_check
        %p1533 = pneg %p1532
      $region94: #{tpu_custom_call.1} parent=5 // pred_check_branch
        %1535 = sbr.rel (%p1533) target = $region96
      $region95: #{tpu_custom_call.1} parent=5 // pred_region
        %s1536 = ssub.s32 %s21, 2
      $region96: #{tpu_custom_call.1} parent=5 // pred_fallthru
        _
    $region6: #{tpu_custom_call.1} parent=1 // loop_footer
      %s25 = sadd.s32 1, %s21
    $region7: #{tpu_custom_call.1} parent=1 // loop_footer_branch
      %20 = sbr.rel target = $region3
    $region8: #{tpu_custom_call.1} parent=1 // loop_exit
      _
    %1537 = vsyncpa [#allocation4], 1
    %s1538 = scalar_lea.sflag [#allocation4], 1
    %1539 = vsyncpa %s1538, 1
    %1540 = vsyncpa [#allocation5], 1
    %s1541 = scalar_lea.sflag [#allocation5], 1
    %1542 = vsyncpa %s1541, 1

</llo_original>
